<compile_context>
chip_gen: v6e
topology: v6e:2x2x1
jax: 0.10.0
libtpu: 0.0.40
codegen_flags: <defaults>
</compile_context>

<pallas_src>
import functools

import numpy as np
import jax
import jax.numpy as jnp
from jax.experimental import pallas as pl
from jax.experimental.pallas import tpu as pltpu


# ----------------------------------------------------------------------------
# Fused kernel: one grid step == one image; everything stays in VMEM.
# ----------------------------------------------------------------------------
def _fused_cnn_kernel(x_ref, bd1_ref, b1_ref, bd2_ref, b2_ref, bd3_ref, b3_ref,
                      ah_ref, rw_ref, o_ref, *, h):
    # conv1 (1x1) + relu: [H, W*Cin] @ [W*Cin, W*Cmid]
    y = jnp.dot(x_ref[0].astype(jnp.bfloat16), bd1_ref[...],
                preferred_element_type=jnp.float32)
    y = jnp.maximum(y + b1_ref[...], 0.0)

    # conv2 / conv3 (3x3, pad=1) + relu.
    # kw taps are pre-summed into one banded matrix per kh in the wrapper
    # (exact identity: all three kw taps multiply the same kh-shifted window).
    # kh halo: XLU roll + zeroed wrapped border row; the three kh windows are
    # concatenated along K so each conv layer is a single dot with K = 3*W*C.
    for bd_ref, b_ref in ((bd2_ref, b2_ref), (bd3_ref, b3_ref)):
        rows = jax.lax.broadcasted_iota(jnp.int32, y.shape, 0)
        win0 = jnp.where(rows == 0, 0.0, pltpu.roll(y, shift=1, axis=0))       # y[r-1]
        win2 = jnp.where(rows == h - 1, 0.0, pltpu.roll(y, shift=h - 1, axis=0))  # y[r+1]
        x3 = jnp.concatenate([win0, y, win2], axis=-1)                         # [H, 3*W*C]
        acc = jnp.dot(x3.astype(jnp.bfloat16), bd_ref[...],
                      preferred_element_type=jnp.float32)
        y = jnp.maximum(acc + b_ref[...], 0.0)

    # bilinear x4 upsample (align_corners=False), separable, width-first
    # (cheaper because H < W*Cout): out = A_h @ (y @ R_w)
    t_up = jnp.dot(y.astype(jnp.bfloat16), rw_ref[...],
                   preferred_element_type=jnp.float32)                         # [H, 4W*Cout]
    out = jnp.dot(ah_ref[...], t_up.astype(jnp.bfloat16),
                  preferred_element_type=jnp.float32)                          # [4H, 4W*Cout]
    o_ref[0] = out.astype(o_ref.dtype)                  # lane-dense store (last dim 4W*Cout)


# ----------------------------------------------------------------------------
# Wrapper-side operand construction (layout plumbing, runs under XLA).
# ----------------------------------------------------------------------------
def _block_expand(mat, width, k=0):
    """kron(eye(width, k=k), mat): [I, O] -> [width*I, width*O]."""
    i, o = mat.shape
    e = jnp.eye(width, k=k, dtype=mat.dtype)
    return (e[:, None, :, None] * mat[None, :, None, :]).reshape(width * i, width * o)


def _conv3x3_banded_weights(w_conv, width):
    """[O, I, 3, 3] -> [3*width*I, width*O]; kw taps pre-summed per kh.

    Exact identity: dot(X, A0) + dot(X, A1) + dot(X, A2) = dot(X, A0+A1+A2)
    because the three kw taps multiply the SAME kh-shifted window.  The kw
    shift (and w-side zero padding) is folded via shifted identities; the
    three kh blocks are stacked along K to match the kernel's window concat
    order [kh=0, kh=1, kh=2]."""
    taps = jnp.transpose(w_conv, (2, 3, 1, 0))            # [3, 3, I, O]
    per_kh = []
    for kh in range(3):
        m = sum(_block_expand(taps[kh, kw], width, k=1 - kw) for kw in range(3))
        per_kh.append(m)
    return jnp.concatenate(per_kh, axis=0)                # [3*W*I, W*O]


def _interp_matrix_1d(in_size, out_size):
    """1D weights of F.interpolate(mode='bilinear', align_corners=False).
    Valid for upsampling (scale >= 1); matches PyTorch's edge clamping."""
    scale = in_size / out_size
    m = np.zeros((out_size, in_size), dtype=np.float32)
    for i in range(out_size):
        src = max((i + 0.5) * scale - 0.5, 0.0)
        i0 = min(int(np.floor(src)), in_size - 1)
        i1 = min(i0 + 1, in_size - 1)
        frac = src - i0
        m[i, i0] += 1.0 - frac
        m[i, i1] += frac
    return m


def three_layer_cnn_forward(params, x_nchw):
    """x_nchw: [N, Cin, H, W] f32 -> [N, Cout, 4H, 4W] f32 (PyTorch semantics)."""
    n, cin, h, w = x_nchw.shape
    cmid = params["w1"].shape[0]
    cout = params["w3"].shape[0]
    ho, wo = 4 * h, 4 * w

    # NCHW -> [N, H, W*Cin]  (width+channels fused onto the lane axis)
    x2d = jnp.transpose(x_nchw, (0, 2, 3, 1)).reshape(n, h, w * cin)

    # conv weights -> (shifted) block-diagonal GEMM operands, bf16 (f32 accum)
    bd1 = _block_expand(jnp.transpose(params["w1"][:, :, 0, 0], (1, 0)),
                        w).astype(jnp.bfloat16)                              # [W*Cin,  W*Cmid]
    bd2 = _conv3x3_banded_weights(params["w2"], w).astype(jnp.bfloat16)      # [3*W*Cmid, W*Cmid]
    bd3 = _conv3x3_banded_weights(params["w3"], w).astype(jnp.bfloat16)      # [3*W*Cmid, W*Cout]
    b1r = jnp.tile(params["b1"], w).reshape(1, w * cmid)                     # f32 biases
    b2r = jnp.tile(params["b2"], w).reshape(1, w * cmid)
    b3r = jnp.tile(params["b3"], w).reshape(1, w * cout)

    # separable bilinear x4 operands (values {0,.125,.375,.625,.875,1} exact in bf16)
    a_h = jnp.asarray(_interp_matrix_1d(h, ho)).astype(jnp.bfloat16)         # [Ho, H]
    r_w = jnp.asarray(np.kron(_interp_matrix_1d(w, wo).T,
                              np.eye(cout, dtype=np.float32))
                      ).astype(jnp.bfloat16)                                 # [W*Cout, Wo*Cout]

    # cost hint for XLA scheduling around the fused call
    flops_per_img = (2 * h * (w * cin) * (w * cmid)
                     + 2 * h * (3 * w * cmid) * (w * cmid)
                     + 2 * h * (3 * w * cmid) * (w * cout)
                     + 2 * h * (w * cout) * (wo * cout)
                     + 2 * ho * h * (wo * cout))
    bytes_accessed = (x2d.size * 4 + n * ho * wo * cout * 4
                      + (bd1.size + bd2.size + bd3.size + a_h.size + r_w.size) * 2
                      + (b1r.size + b2r.size + b3r.size) * 4)
    cost = pl.CostEstimate(flops=n * flops_per_img, transcendentals=0,
                           bytes_accessed=bytes_accessed)

    out2d = pl.pallas_call(
        functools.partial(_fused_cnn_kernel, h=h),
        out_shape=jax.ShapeDtypeStruct((n, ho, wo * cout), jnp.float32),
        grid_spec=pltpu.PrefetchScalarGridSpec(
            num_scalar_prefetch=0,
            grid=(n,),
            in_specs=[
                pl.BlockSpec((1, h, w * cin), lambda b: (b, 0, 0)),          # x (per image)
                pl.BlockSpec((w * cin, w * cmid), lambda b: (0, 0)),         # bd1
                pl.BlockSpec((1, w * cmid), lambda b: (0, 0)),               # b1
                pl.BlockSpec((3 * w * cmid, w * cmid), lambda b: (0, 0)),    # bd2 (banded, K-stacked)
                pl.BlockSpec((1, w * cmid), lambda b: (0, 0)),               # b2
                pl.BlockSpec((3 * w * cmid, w * cout), lambda b: (0, 0)),    # bd3 (banded, K-stacked)
                pl.BlockSpec((1, w * cout), lambda b: (0, 0)),               # b3
                pl.BlockSpec((ho, h), lambda b: (0, 0)),                     # height interp
                pl.BlockSpec((w * cout, wo * cout), lambda b: (0, 0)),       # width interp
            ],
            out_specs=pl.BlockSpec((1, ho, wo * cout), lambda b: (b, 0, 0)),
        ),
        compiler_params=pltpu.CompilerParams(
            dimension_semantics=("parallel",),
            vmem_limit_bytes=32 * 1024 * 1024,
        ),
        cost_estimate=cost,
    )(x2d, bd1, b1r, bd2, b2r, bd3, b3r, a_h, r_w)

    # lane-dense [N, Ho, Wo*Cout] -> NCHW (pure layout plumbing; drop if NHWC ok)
    return jnp.transpose(out2d.reshape(n, ho, wo, cout), (0, 3, 1, 2))


# ----------------------------------------------------------------------------
# Deterministic parameter init (PyTorch Conv2d shapes) + numpy reference.
# ----------------------------------------------------------------------------
def init_params(key, in_ch, mid_ch, out_ch):
    ks = jax.random.split(key, 6)

    def conv_w(k, o, i, kh, kw):
        bound = 1.0 / np.sqrt(i * kh * kw)
        return jax.random.uniform(k, (o, i, kh, kw), jnp.float32, -bound, bound)

    def conv_b(k, o, i, kh, kw):
        bound = 1.0 / np.sqrt(i * kh * kw)
        return jax.random.uniform(k, (o,), jnp.float32, -bound, bound)

    return {
        "w1": conv_w(ks[0], mid_ch, in_ch, 1, 1), "b1": conv_b(ks[1], mid_ch, in_ch, 1, 1),
        "w2": conv_w(ks[2], mid_ch, mid_ch, 3, 3), "b2": conv_b(ks[3], mid_ch, mid_ch, 3, 3),
        "w3": conv_w(ks[4], out_ch, mid_ch, 3, 3), "b3": conv_b(ks[5], out_ch, mid_ch, 3, 3),
    }


def _reference_forward_np(params, x):
    """Pure numpy (f64) reference of the PyTorch module, for a sanity check."""
    p = {k: np.asarray(v, np.float64) for k, v in params.items()}
    x = np.asarray(x, np.float64)

    def conv2d(inp, w_, b_, pad):
        n_, _, h_, wd_ = inp.shape
        co, _, kh, kw = w_.shape
        xp = np.pad(inp, ((0, 0), (0, 0), (pad, pad), (pad, pad)))
        out = np.zeros((n_, co, h_, wd_), dtype=np.float64)
        for i in range(kh):
            for j in range(kw):
                out += np.einsum("nchw,oc->nohw", xp[:, :, i:i + h_, j:j + wd_],
                                 w_[:, :, i, j])
        return out + b_[None, :, None, None]

    y = np.maximum(conv2d(x, p["w1"], p["b1"], 0), 0.0)
    y = np.maximum(conv2d(y, p["w2"], p["b2"], 1), 0.0)
    y = np.maximum(conv2d(y, p["w3"], p["b3"], 1), 0.0)
    _, _, h_, wd_ = y.shape
    a = _interp_matrix_1d(h_, 4 * h_).astype(np.float64)
    b = _interp_matrix_1d(wd_, 4 * wd_).astype(np.float64)
    return np.einsum("Hh,Ww,nchw->ncHW", a, b, y)


if __name__ == "__main__":
    N, IN_CH, MID_CH, OUT_CH, H, W = 2, 4, 8, 8, 16, 16

    key = jax.random.PRNGKey(0)
    k_x, k_p = jax.random.split(key)
    x = jax.random.normal(k_x, (N, IN_CH, H, W), dtype=jnp.float32)
    params = init_params(k_p, IN_CH, MID_CH, OUT_CH)

    fwd = jax.jit(three_layer_cnn_forward)
    out = fwd(params, x)
    out = jax.block_until_ready(out)

    assert out.shape == (N, OUT_CH, 4 * H, 4 * W), out.shape
    assert out.dtype == jnp.float32

    # Loose-tolerance sanity check vs. a numpy reference (catches layout bugs;
    # tolerance accommodates bf16-operand / f32-accumulate MXU matmuls, which
    # match TPU default-precision f32 matmul behavior).
    ref = _reference_forward_np(params, x)
    np.testing.assert_allclose(np.asarray(out), ref, rtol=5e-2, atol=5e-2)

    print("KERNEL_OK")
</pallas_src>

<mosaic_0001>
module attributes {stable_mosaic.version = 11 : i64} {
  func.func @_fused_cnn_kernel(%arg0: i32, %arg1: memref<1x16x64xf32, #tpu.memory_space<vmem>>, %arg2: memref<64x128xbf16, #tpu.memory_space<vmem>>, %arg3: memref<1x128xf32, #tpu.memory_space<vmem>>, %arg4: memref<384x128xbf16, #tpu.memory_space<vmem>>, %arg5: memref<1x128xf32, #tpu.memory_space<vmem>>, %arg6: memref<384x128xbf16, #tpu.memory_space<vmem>>, %arg7: memref<1x128xf32, #tpu.memory_space<vmem>>, %arg8: memref<64x16xbf16, #tpu.memory_space<vmem>>, %arg9: memref<128x512xbf16, #tpu.memory_space<vmem>>, %arg10: memref<1x64x512xf32, #tpu.memory_space<vmem>>) attributes {dimension_semantics = [#tpu.dimension_semantics<parallel>], iteration_bounds = array<i64: 2>, scalar_prefetch = 0 : i64, scratch_operands = 0 : i64, tpu.core_type = #tpu.core_type<tc>, window_params = [{transform_indices = @transform_0, window_bounds = array<i64: 1, 16, 64>}, {pipeline_mode = #tpu.pipeline_mode<synchronous>, transform_indices = @transform_1, window_bounds = array<i64: 64, 128>}, {pipeline_mode = #tpu.pipeline_mode<synchronous>, transform_indices = @transform_2, window_bounds = array<i64: 1, 128>}, {pipeline_mode = #tpu.pipeline_mode<synchronous>, transform_indices = @transform_3, window_bounds = array<i64: 384, 128>}, {pipeline_mode = #tpu.pipeline_mode<synchronous>, transform_indices = @transform_4, window_bounds = array<i64: 1, 128>}, {pipeline_mode = #tpu.pipeline_mode<synchronous>, transform_indices = @transform_5, window_bounds = array<i64: 384, 128>}, {pipeline_mode = #tpu.pipeline_mode<synchronous>, transform_indices = @transform_6, window_bounds = array<i64: 1, 128>}, {pipeline_mode = #tpu.pipeline_mode<synchronous>, transform_indices = @transform_7, window_bounds = array<i64: 64, 16>}, {pipeline_mode = #tpu.pipeline_mode<synchronous>, transform_indices = @transform_8, window_bounds = array<i64: 128, 512>}, {transform_indices = @transform_9, window_bounds = array<i64: 1, 64, 512>}]} {
    %c0 = arith.constant 0 : index
    %c0_0 = arith.constant 0 : index
    %c0_1 = arith.constant 0 : index
    %0 = vector.load %arg1[%c0, %c0_0, %c0_1] : memref<1x16x64xf32, #tpu.memory_space<vmem>>, vector<1x16x64xf32>
    %1 = vector.shape_cast %0 : vector<1x16x64xf32> to vector<16x64xf32>
    %2 = arith.truncf %1 : vector<16x64xf32> to vector<16x64xbf16>
    %c0_2 = arith.constant 0 : index
    %c0_3 = arith.constant 0 : index
    %3 = vector.load %arg2[%c0_2, %c0_3] : memref<64x128xbf16, #tpu.memory_space<vmem>>, vector<64x128xbf16>
    %cst = arith.constant dense<0.000000e+00> : vector<16x128xf32>
    %4 = tpu.matmul %2, %3, %cst {dimension_numbers = #tpu.dot_dimension_numbers<[1], [0], [0], [1], [0, 0, 1, 1], [], []>} : vector<16x64xbf16>, vector<64x128xbf16>, vector<16x128xf32> -> vector<16x128xf32>
    %c0_4 = arith.constant 0 : index
    %c0_5 = arith.constant 0 : index
    %5 = vector.load %arg3[%c0_4, %c0_5] : memref<1x128xf32, #tpu.memory_space<vmem>>, vector<1x128xf32>
    %6 = vector.broadcast %5 : vector<1x128xf32> to vector<16x128xf32>
    %7 = arith.addf %4, %6 : vector<16x128xf32>
    %cst_6 = arith.constant 0.000000e+00 : f32
    %8 = vector.broadcast %cst_6 : f32 to vector<16x128xf32>
    %9 = arith.maximumf %7, %8 : vector<16x128xf32>
    %10 = tpu.iota {dimensions = array<i32: 0>} : vector<16x128xi32>
    %c0_i32 = arith.constant 0 : i32
    %11 = vector.broadcast %c0_i32 : i32 to vector<16x128xi32>
    %12 = arith.cmpi eq, %10, %11 : vector<16x128xi32>
    %c1_i32 = arith.constant 1 : i32
    %13 = tpu.dynamic_rotate %9 by %c1_i32 dim 0 : vector<16x128xf32>, i32 -> vector<16x128xf32>
    %cst_7 = arith.constant 0.000000e+00 : f32
    %14 = vector.broadcast %cst_7 : f32 to vector<16x128xf32>
    %15 = arith.select %12, %14, %13 : vector<16x128xi1>, vector<16x128xf32>
    %c15_i32 = arith.constant 15 : i32
    %16 = vector.broadcast %c15_i32 : i32 to vector<16x128xi32>
    %17 = arith.cmpi eq, %10, %16 : vector<16x128xi32>
    %c15_i32_8 = arith.constant 15 : i32
    %18 = tpu.dynamic_rotate %9 by %c15_i32_8 dim 0 : vector<16x128xf32>, i32 -> vector<16x128xf32>
    %cst_9 = arith.constant 0.000000e+00 : f32
    %19 = vector.broadcast %cst_9 : f32 to vector<16x128xf32>
    %20 = arith.select %17, %19, %18 : vector<16x128xi1>, vector<16x128xf32>
    %21 = tpu.concatenate %15, %9, %20 in 1 : vector<16x128xf32>, vector<16x128xf32>, vector<16x128xf32> -> vector<16x384xf32>
    %22 = arith.truncf %21 : vector<16x384xf32> to vector<16x384xbf16>
    %c0_10 = arith.constant 0 : index
    %c0_11 = arith.constant 0 : index
    %23 = vector.load %arg4[%c0_10, %c0_11] : memref<384x128xbf16, #tpu.memory_space<vmem>>, vector<384x128xbf16>
    %cst_12 = arith.constant dense<0.000000e+00> : vector<16x128xf32>
    %24 = tpu.matmul %22, %23, %cst_12 {dimension_numbers = #tpu.dot_dimension_numbers<[1], [0], [0], [1], [0, 0, 1, 1], [], []>} : vector<16x384xbf16>, vector<384x128xbf16>, vector<16x128xf32> -> vector<16x128xf32>
    %c0_13 = arith.constant 0 : index
    %c0_14 = arith.constant 0 : index
    %25 = vector.load %arg5[%c0_13, %c0_14] : memref<1x128xf32, #tpu.memory_space<vmem>>, vector<1x128xf32>
    %26 = vector.broadcast %25 : vector<1x128xf32> to vector<16x128xf32>
    %27 = arith.addf %24, %26 : vector<16x128xf32>
    %cst_15 = arith.constant 0.000000e+00 : f32
    %28 = vector.broadcast %cst_15 : f32 to vector<16x128xf32>
    %29 = arith.maximumf %27, %28 : vector<16x128xf32>
    %30 = tpu.iota {dimensions = array<i32: 0>} : vector<16x128xi32>
    %c0_i32_16 = arith.constant 0 : i32
    %31 = vector.broadcast %c0_i32_16 : i32 to vector<16x128xi32>
    %32 = arith.cmpi eq, %30, %31 : vector<16x128xi32>
    %c1_i32_17 = arith.constant 1 : i32
    %33 = tpu.dynamic_rotate %29 by %c1_i32_17 dim 0 : vector<16x128xf32>, i32 -> vector<16x128xf32>
    %cst_18 = arith.constant 0.000000e+00 : f32
    %34 = vector.broadcast %cst_18 : f32 to vector<16x128xf32>
    %35 = arith.select %32, %34, %33 : vector<16x128xi1>, vector<16x128xf32>
    %c15_i32_19 = arith.constant 15 : i32
    %36 = vector.broadcast %c15_i32_19 : i32 to vector<16x128xi32>
    %37 = arith.cmpi eq, %30, %36 : vector<16x128xi32>
    %c15_i32_20 = arith.constant 15 : i32
    %38 = tpu.dynamic_rotate %29 by %c15_i32_20 dim 0 : vector<16x128xf32>, i32 -> vector<16x128xf32>
    %cst_21 = arith.constant 0.000000e+00 : f32
    %39 = vector.broadcast %cst_21 : f32 to vector<16x128xf32>
    %40 = arith.select %37, %39, %38 : vector<16x128xi1>, vector<16x128xf32>
    %41 = tpu.concatenate %35, %29, %40 in 1 : vector<16x128xf32>, vector<16x128xf32>, vector<16x128xf32> -> vector<16x384xf32>
    %42 = arith.truncf %41 : vector<16x384xf32> to vector<16x384xbf16>
    %c0_22 = arith.constant 0 : index
    %c0_23 = arith.constant 0 : index
    %43 = vector.load %arg6[%c0_22, %c0_23] : memref<384x128xbf16, #tpu.memory_space<vmem>>, vector<384x128xbf16>
    %cst_24 = arith.constant dense<0.000000e+00> : vector<16x128xf32>
    %44 = tpu.matmul %42, %43, %cst_24 {dimension_numbers = #tpu.dot_dimension_numbers<[1], [0], [0], [1], [0, 0, 1, 1], [], []>} : vector<16x384xbf16>, vector<384x128xbf16>, vector<16x128xf32> -> vector<16x128xf32>
    %c0_25 = arith.constant 0 : index
    %c0_26 = arith.constant 0 : index
    %45 = vector.load %arg7[%c0_25, %c0_26] : memref<1x128xf32, #tpu.memory_space<vmem>>, vector<1x128xf32>
    %46 = vector.broadcast %45 : vector<1x128xf32> to vector<16x128xf32>
    %47 = arith.addf %44, %46 : vector<16x128xf32>
    %cst_27 = arith.constant 0.000000e+00 : f32
    %48 = vector.broadcast %cst_27 : f32 to vector<16x128xf32>
    %49 = arith.maximumf %47, %48 : vector<16x128xf32>
    %50 = arith.truncf %49 : vector<16x128xf32> to vector<16x128xbf16>
    %c0_28 = arith.constant 0 : index
    %c0_29 = arith.constant 0 : index
    %51 = vector.load %arg9[%c0_28, %c0_29] : memref<128x512xbf16, #tpu.memory_space<vmem>>, vector<128x512xbf16>
    %cst_30 = arith.constant dense<0.000000e+00> : vector<16x512xf32>
    %52 = tpu.matmul %50, %51, %cst_30 {dimension_numbers = #tpu.dot_dimension_numbers<[1], [0], [0], [1], [0, 0, 1, 1], [], []>} : vector<16x128xbf16>, vector<128x512xbf16>, vector<16x512xf32> -> vector<16x512xf32>
    %c0_31 = arith.constant 0 : index
    %c0_32 = arith.constant 0 : index
    %53 = vector.load %arg8[%c0_31, %c0_32] : memref<64x16xbf16, #tpu.memory_space<vmem>>, vector<64x16xbf16>
    %54 = arith.truncf %52 : vector<16x512xf32> to vector<16x512xbf16>
    %cst_33 = arith.constant dense<0.000000e+00> : vector<64x512xf32>
    %55 = tpu.matmul %53, %54, %cst_33 {dimension_numbers = #tpu.dot_dimension_numbers<[1], [0], [0], [1], [0, 0, 1, 1], [], []>} : vector<64x16xbf16>, vector<16x512xbf16>, vector<64x512xf32> -> vector<64x512xf32>
    %c0_34 = arith.constant 0 : index
    %c0_35 = arith.constant 0 : index
    %c0_36 = arith.constant 0 : index
    %56 = vector.load %arg10[%c0_34, %c0_35, %c0_36] : memref<1x64x512xf32, #tpu.memory_space<vmem>>, vector<1x64x512xf32>
    %57 = vector.shape_cast %56 : vector<1x64x512xf32> to vector<64x512xf32>
    %58 = vector.shape_cast %55 : vector<64x512xf32> to vector<1x64x512xf32>
    tpu.vector_store %arg10[%c0_34, %c0_35, %c0_36], %58 {strides = array<i32>} : memref<1x64x512xf32, #tpu.memory_space<vmem>>, vector<1x64x512xf32>,
    return
  }
  func.func @transform_0(%arg0: i32) -> (i32, i32, i32) {
    %c0_i32 = arith.constant 0 : i32
    %c0_i32_0 = arith.constant 0 : i32
    %c0_i32_1 = arith.constant 0 : i32
    return %arg0, %c0_i32, %c0_i32_0 : i32, i32, i32
  }
  func.func @transform_1(%arg0: i32) -> (i32, i32) {
    %c0_i32 = arith.constant 0 : i32
    %c0_i32_0 = arith.constant 0 : i32
    %c0_i32_1 = arith.constant 0 : i32
    return %c0_i32, %c0_i32_0 : i32, i32
  }
  func.func @transform_2(%arg0: i32) -> (i32, i32) {
    %c0_i32 = arith.constant 0 : i32
    %c0_i32_0 = arith.constant 0 : i32
    %c0_i32_1 = arith.constant 0 : i32
    return %c0_i32, %c0_i32_0 : i32, i32
  }
  func.func @transform_3(%arg0: i32) -> (i32, i32) {
    %c0_i32 = arith.constant 0 : i32
    %c0_i32_0 = arith.constant 0 : i32
    %c0_i32_1 = arith.constant 0 : i32
    return %c0_i32, %c0_i32_0 : i32, i32
  }
  func.func @transform_4(%arg0: i32) -> (i32, i32) {
    %c0_i32 = arith.constant 0 : i32
    %c0_i32_0 = arith.constant 0 : i32
    %c0_i32_1 = arith.constant 0 : i32
    return %c0_i32, %c0_i32_0 : i32, i32
  }
  func.func @transform_5(%arg0: i32) -> (i32, i32) {
    %c0_i32 = arith.constant 0 : i32
    %c0_i32_0 = arith.constant 0 : i32
    %c0_i32_1 = arith.constant 0 : i32
    return %c0_i32, %c0_i32_0 : i32, i32
  }
  func.func @transform_6(%arg0: i32) -> (i32, i32) {
    %c0_i32 = arith.constant 0 : i32
    %c0_i32_0 = arith.constant 0 : i32
    %c0_i32_1 = arith.constant 0 : i32
    return %c0_i32, %c0_i32_0 : i32, i32
  }
  func.func @transform_7(%arg0: i32) -> (i32, i32) {
    %c0_i32 = arith.constant 0 : i32
    %c0_i32_0 = arith.constant 0 : i32
    %c0_i32_1 = arith.constant 0 : i32
    return %c0_i32, %c0_i32_0 : i32, i32
  }
  func.func @transform_8(%arg0: i32) -> (i32, i32) {
    %c0_i32 = arith.constant 0 : i32
    %c0_i32_0 = arith.constant 0 : i32
    %c0_i32_1 = arith.constant 0 : i32
    return %c0_i32, %c0_i32_0 : i32, i32
  }
  func.func @transform_9(%arg0: i32) -> (i32, i32, i32) {
    %c0_i32 = arith.constant 0 : i32
    %c0_i32_0 = arith.constant 0 : i32
    %c0_i32_1 = arith.constant 0 : i32
    return %arg0, %c0_i32, %c0_i32_0 : i32, i32, i32
  }
}

</mosaic_0001>

<llo_original>
// kernel: tile.18
$region0: #{tile.18}
  #allocation0 [shape = 's32[1]{0}', space=sflag, size = 0x4, scoped, tag = 'scoped memory for tile.18']
  %s0 = inlined_call_operand.vmem [shape: f32[8], index: 0, kind: input, shape index: {}]
  %s1 = inlined_call_operand.vmem [shape: f32[16,8], index: 1, kind: output, shape index: {}]
  // Predicated region
  $region2: #{tile.18} parent=0 // pred_check
    _
  $region3: #{tile.18} parent=0 // pred_check_branch
    %3 = sbr.rel (0) target = $region5
  $region4: #{tile.18} parent=0 // pred_region
    _
  $region5: #{tile.18} parent=0 // pred_fallthru
    _
  %v4 = vld [vmem:[%s0] ss:$0 sm:$0xff]
  %5 = vst [vmem:[%s1] sm:$0xff] %v4
  %s6 = scalar_lea.vmem %s1, 8
  %7 = vst [vmem:[%s6] sm:$0xff] %v4

// kernel: tile.19
$region0: #{tile.19}
  %s0 = inlined_call_operand.vmem [shape: f32[16,8], index: 0, kind: input, shape index: {}]
  %s1 = inlined_call_operand.vmem [shape: f32[1,128], index: 1, kind: output, shape index: {}]
  $region1: #{tile.19} parent=0
    #allocation0 [shape = 'u8[4096]{0}', space=vmem, size = 0x1000, scoped, tag = 'scoped mem for output reshape']
    %v2 = vld [vmem:[%s0] sm:$0x1]
    %vm3 = vcmask 64512
    %4 = vst.msk [vmem:[#allocation0] sm:$0x1] %vm3, %v2
    %s5 = scalar_lea.vmem %s0, 15
    %v6 = vld [vmem:[%s5] sm:$0x1]
    %7 = vrot.lane.b32.xlu0 %v6, 120
    %v8 = vpop.permute.xlu0 %7
    %vm9 = vcmask 1048512
    %10 = vst.msk [vmem:[#allocation0] sm:$0x1] %vm9, %v8
    %s11 = scalar_lea.vmem %s0, 14
    %v12 = vld [vmem:[%s11] sm:$0x1]
    %13 = vrot.lane.b32.xlu0 %v12, 112
    %v14 = vpop.permute.xlu0 %13
    %vm15 = vcmask 982912
    %16 = vst.msk [vmem:[#allocation0] sm:$0x1] %vm15, %v14
    %s17 = scalar_lea.vmem %s0, 13
    %v18 = vld [vmem:[%s17] sm:$0x1]
    %19 = vrot.lane.b32.xlu0 %v18, 104
    %v20 = vpop.permute.xlu0 %19
    %vm21 = vcmask 917312
    %22 = vst.msk [vmem:[#allocation0] sm:$0x1] %vm21, %v20
    %s23 = scalar_lea.vmem %s0, 12
    %v24 = vld [vmem:[%s23] sm:$0x1]
    %25 = vrot.lane.b32.xlu0 %v24, 96
    %v26 = vpop.permute.xlu0 %25
    %vm27 = vcmask 851712
    %28 = vst.msk [vmem:[#allocation0] sm:$0x1] %vm27, %v26
    %s29 = scalar_lea.vmem %s0, 11
    %v30 = vld [vmem:[%s29] sm:$0x1]
    %31 = vrot.lane.b32.xlu0 %v30, 88
    %v32 = vpop.permute.xlu0 %31
    %vm33 = vcmask 786112
    %34 = vst.msk [vmem:[#allocation0] sm:$0x1] %vm33, %v32
    %s35 = scalar_lea.vmem %s0, 10
    %v36 = vld [vmem:[%s35] sm:$0x1]
    %37 = vrot.lane.b32.xlu0 %v36, 80
    %v38 = vpop.permute.xlu0 %37
    %vm39 = vcmask 720512
    %40 = vst.msk [vmem:[#allocation0] sm:$0x1] %vm39, %v38
    %s41 = scalar_lea.vmem %s0, 9
    %v42 = vld [vmem:[%s41] sm:$0x1]
    %43 = vrot.lane.b32.xlu0 %v42, 72
    %v44 = vpop.permute.xlu0 %43
    %vm45 = vcmask 654912
    %46 = vst.msk [vmem:[#allocation0] sm:$0x1] %vm45, %v44
    %s47 = scalar_lea.vmem %s0, 8
    %v48 = vld [vmem:[%s47] sm:$0x1]
    %49 = vrot.lane.b32.xlu0 %v48, 64
    %v50 = vpop.permute.xlu0 %49
    %vm51 = vcmask 589312
    %52 = vst.msk [vmem:[#allocation0] sm:$0x1] %vm51, %v50
    %s53 = scalar_lea.vmem %s0, 7
    %v54 = vld [vmem:[%s53] sm:$0x1]
    %55 = vrot.lane.b32.xlu0 %v54, 56
    %v56 = vpop.permute.xlu0 %55
    %vm57 = vcmask 523712
    %58 = vst.msk [vmem:[#allocation0] sm:$0x1] %vm57, %v56
    %s59 = scalar_lea.vmem %s0, 6
    %v60 = vld [vmem:[%s59] sm:$0x1]
    %61 = vrot.lane.b32.xlu0 %v60, 48
    %v62 = vpop.permute.xlu0 %61
    %vm63 = vcmask 458112
    %64 = vst.msk [vmem:[#allocation0] sm:$0x1] %vm63, %v62
    %s65 = scalar_lea.vmem %s0, 5
    %v66 = vld [vmem:[%s65] sm:$0x1]
    %67 = vrot.lane.b32.xlu0 %v66, 40
    %v68 = vpop.permute.xlu0 %67
    %vm69 = vcmask 392512
    %70 = vst.msk [vmem:[#allocation0] sm:$0x1] %vm69, %v68
    %s71 = scalar_lea.vmem %s0, 4
    %v72 = vld [vmem:[%s71] sm:$0x1]
    %73 = vrot.lane.b32.xlu0 %v72, 32
    %v74 = vpop.permute.xlu0 %73
    %vm75 = vcmask 326912
    %76 = vst.msk [vmem:[#allocation0] sm:$0x1] %vm75, %v74
    %s77 = scalar_lea.vmem %s0, 3
    %v78 = vld [vmem:[%s77] sm:$0x1]
    %79 = vrot.lane.b32.xlu0 %v78, 24
    %v80 = vpop.permute.xlu0 %79
    %vm81 = vcmask 261312
    %82 = vst.msk [vmem:[#allocation0] sm:$0x1] %vm81, %v80
    %s83 = scalar_lea.vmem %s0, 2
    %v84 = vld [vmem:[%s83] sm:$0x1]
    %85 = vrot.lane.b32.xlu0 %v84, 16
    %v86 = vpop.permute.xlu0 %85
    %vm87 = vcmask 195712
    %88 = vst.msk [vmem:[#allocation0] sm:$0x1] %vm87, %v86
    %s89 = scalar_lea.vmem %s0, 1
    %v90 = vld [vmem:[%s89] sm:$0x1]
    %91 = vrot.lane.b32.xlu0 %v90, 8
    %v92 = vpop.permute.xlu0 %91
    %vm93 = vcmask 130112
    %94 = vst.msk [vmem:[#allocation0] sm:$0x1] %vm93, %v92
    %s96 = sshll.u32 1, 1
    %s97 = ssub.s32 %s96, 1
    %v99 = vld [vmem:[#allocation0] sm:%s97]
    %s100 = sshll.u32 1, 1
    %s101 = ssub.s32 %s100, 1
    %102 = vst [vmem:[%s1] sm:%s101] %v99

// kernel: three_layer_cnn_forward.1
$region0: #{three_layer_cnn_forward.1}
  #allocation0 [shape = 'u32[]', space=smem, size = 0x4, offset = 0x4, fixed_abs, tag = 'smem constant byte address 0x4 - core index']
  #allocation1 [shape = 'u32[144,128]{1,0:T(1,128)}', space=vmem, size = 0x12000, scoped, tag = 'internal scratch']
  %s0 = inlined_call_operand.vmem [shape: f32[2,16,64], index: 0, kind: input, shape index: {}]
  %s1 = inlined_call_operand.vmem [shape: bf16[64,128], index: 1, kind: input, shape index: {}]
  %s2 = inlined_call_operand.vmem [shape: f32[1,128], index: 2, kind: input, shape index: {}]
  %s3 = inlined_call_operand.vmem [shape: bf16[384,128], index: 3, kind: input, shape index: {}]
  %s4 = inlined_call_operand.vmem [shape: f32[1,128], index: 4, kind: input, shape index: {}]
  %s5 = inlined_call_operand.vmem [shape: bf16[384,128], index: 5, kind: input, shape index: {}]
  %s6 = inlined_call_operand.vmem [shape: f32[1,128], index: 6, kind: input, shape index: {}]
  %s7 = inlined_call_operand.vmem [shape: bf16[64,16], index: 7, kind: input, shape index: {}]
  %s8 = inlined_call_operand.vmem [shape: bf16[128,512], index: 8, kind: input, shape index: {}]
  %s9 = inlined_call_operand.vmem [shape: f32[2,64,512], index: 9, kind: output, shape index: {}]
  %s10 = sld [smem:[#allocation0]]
  $region69: #{three_layer_cnn_forward.1} parent=0
    _
  %s12 = ssub.s32 1, %s10
  %s13 = scalar_select 0, %s12, %s10
  loop: start=0, step=1, limit=4
  $region2: #{three_layer_cnn_forward.1} parent=0 // loop_pre_header
    _
  $region3: #{three_layer_cnn_forward.1} parent=0 // loop_header
    %s15 = sphi 0, %s19
    %p16 = scmp.ge.s32.totalorder %s15, 4
    %s25 = sphi 0, %s27
    %s28 = sphi 0, %s25
    %s29 = sphi 0, %s28
    %s45 = sphi 0, %s29
    %s49 = sphi 0, %s49
    %s51 = sphi 0, %s49
    %s52 = sphi 0, %s51
    %s66 = sphi 0, %s52
    %s70 = sphi 0, %s70
    %s72 = sphi 0, %s70
    %s73 = sphi 0, %s72
    %s87 = sphi 0, %s73
    %s91 = sphi 0, %s91
    %s93 = sphi 0, %s91
    %s94 = sphi 0, %s93
    %s108 = sphi 0, %s94
    %s112 = sphi 0, %s112
    %s114 = sphi 0, %s112
    %s115 = sphi 0, %s114
    %s129 = sphi 0, %s115
    %s133 = sphi 0, %s133
    %s135 = sphi 0, %s133
    %s136 = sphi 0, %s135
    %s150 = sphi 0, %s136
    %s154 = sphi 0, %s154
    %s156 = sphi 0, %s154
    %s157 = sphi 0, %s156
    %s171 = sphi 0, %s157
    %s175 = sphi 0, %s175
    %s177 = sphi 0, %s175
    %s178 = sphi 0, %s177
    %s192 = sphi 0, %s178
    %s196 = sphi 0, %s196
    %s198 = sphi 0, %s196
    %s199 = sphi 0, %s198
    %s213 = sphi 0, %s199
    %s219 = sphi 0, %s221
    %s222 = sphi 0, %s219
    %s223 = sphi 0, %s222
    %s239 = sphi 0, %s223
  $region4: #{three_layer_cnn_forward.1} parent=0 // loop_header_branch
    %18 = sbr.rel (%p16) target = $region8
  $region5: #{three_layer_cnn_forward.1} parent=0 // loop_body
    %s20 = ssub.s32 %s15, 1
    %s21 = ssub.s32 %s15, 2
    %s22 = sadd.s32 %s15, 1
    %s23 = ssub.s32 %s15, %s22
    %p24 = scmp.eq.s32.totalorder %s23, 0
    %s26 = sadd.s32 %s25, 1
    %s27 = scalar_select %p24, %s25, %s26
    %p30 = pneg %p24
    %p31 = scmp.eq.s32.totalorder %s15, 1
    %p32 = por %p30, %p31
    %p33 = scmp.ne.s32.totalorder %s25, %s28
    %p34 = scmp.eq.s32.totalorder %s15, 0
    %p35 = por %p33, %p34
    %p36 = scmp.ne.s32.totalorder %s25, %s28
    %p37 = scmp.eq.s32.totalorder %s20, 1
    %p38 = por %p36, %p37
    %p39 = scmp.ne.s32.totalorder %s28, %s29
    %p40 = scmp.eq.s32.totalorder %s20, 0
    %p41 = por %p39, %p40
    %p42 = scmp.ne.s32.totalorder %s28, %s29
    %p43 = scmp.eq.s32.totalorder %s21, 1
    %p44 = por %p42, %p43
    %p46 = scmp.ne.s32.totalorder %s29, %s45
    %p47 = scmp.eq.s32.totalorder %s21, 0
    %p48 = por %p46, %p47
    %s50 = sadd.s32 %s49, 1
    %p53 = scmp.eq.s32.totalorder %s15, 1
    %p54 = scmp.ne.s32.totalorder %s49, %s51
    %p55 = scmp.eq.s32.totalorder %s15, 0
    %p56 = por %p54, %p55
    %p57 = scmp.ne.s32.totalorder %s49, %s51
    %p58 = scmp.eq.s32.totalorder %s20, 1
    %p59 = por %p57, %p58
    %p60 = scmp.ne.s32.totalorder %s51, %s52
    %p61 = scmp.eq.s32.totalorder %s20, 0
    %p62 = por %p60, %p61
    %p63 = scmp.ne.s32.totalorder %s51, %s52
    %p64 = scmp.eq.s32.totalorder %s21, 1
    %p65 = por %p63, %p64
    %p67 = scmp.ne.s32.totalorder %s52, %s66
    %p68 = scmp.eq.s32.totalorder %s21, 0
    %p69 = por %p67, %p68
    %s71 = sadd.s32 %s70, 1
    %p74 = scmp.eq.s32.totalorder %s15, 1
    %p75 = scmp.ne.s32.totalorder %s70, %s72
    %p76 = scmp.eq.s32.totalorder %s15, 0
    %p77 = por %p75, %p76
    %p78 = scmp.ne.s32.totalorder %s70, %s72
    %p79 = scmp.eq.s32.totalorder %s20, 1
    %p80 = por %p78, %p79
    %p81 = scmp.ne.s32.totalorder %s72, %s73
    %p82 = scmp.eq.s32.totalorder %s20, 0
    %p83 = por %p81, %p82
    %p84 = scmp.ne.s32.totalorder %s72, %s73
    %p85 = scmp.eq.s32.totalorder %s21, 1
    %p86 = por %p84, %p85
    %p88 = scmp.ne.s32.totalorder %s73, %s87
    %p89 = scmp.eq.s32.totalorder %s21, 0
    %p90 = por %p88, %p89
    %s92 = sadd.s32 %s91, 1
    %p95 = scmp.eq.s32.totalorder %s15, 1
    %p96 = scmp.ne.s32.totalorder %s91, %s93
    %p97 = scmp.eq.s32.totalorder %s15, 0
    %p98 = por %p96, %p97
    %p99 = scmp.ne.s32.totalorder %s91, %s93
    %p100 = scmp.eq.s32.totalorder %s20, 1
    %p101 = por %p99, %p100
    %p102 = scmp.ne.s32.totalorder %s93, %s94
    %p103 = scmp.eq.s32.totalorder %s20, 0
    %p104 = por %p102, %p103
    %p105 = scmp.ne.s32.totalorder %s93, %s94
    %p106 = scmp.eq.s32.totalorder %s21, 1
    %p107 = por %p105, %p106
    %p109 = scmp.ne.s32.totalorder %s94, %s108
    %p110 = scmp.eq.s32.totalorder %s21, 0
    %p111 = por %p109, %p110
    %s113 = sadd.s32 %s112, 1
    %p116 = scmp.eq.s32.totalorder %s15, 1
    %p117 = scmp.ne.s32.totalorder %s112, %s114
    %p118 = scmp.eq.s32.totalorder %s15, 0
    %p119 = por %p117, %p118
    %p120 = scmp.ne.s32.totalorder %s112, %s114
    %p121 = scmp.eq.s32.totalorder %s20, 1
    %p122 = por %p120, %p121
    %p123 = scmp.ne.s32.totalorder %s114, %s115
    %p124 = scmp.eq.s32.totalorder %s20, 0
    %p125 = por %p123, %p124
    %p126 = scmp.ne.s32.totalorder %s114, %s115
    %p127 = scmp.eq.s32.totalorder %s21, 1
    %p128 = por %p126, %p127
    %p130 = scmp.ne.s32.totalorder %s115, %s129
    %p131 = scmp.eq.s32.totalorder %s21, 0
    %p132 = por %p130, %p131
    %s134 = sadd.s32 %s133, 1
    %p137 = scmp.eq.s32.totalorder %s15, 1
    %p138 = scmp.ne.s32.totalorder %s133, %s135
    %p139 = scmp.eq.s32.totalorder %s15, 0
    %p140 = por %p138, %p139
    %p141 = scmp.ne.s32.totalorder %s133, %s135
    %p142 = scmp.eq.s32.totalorder %s20, 1
    %p143 = por %p141, %p142
    %p144 = scmp.ne.s32.totalorder %s135, %s136
    %p145 = scmp.eq.s32.totalorder %s20, 0
    %p146 = por %p144, %p145
    %p147 = scmp.ne.s32.totalorder %s135, %s136
    %p148 = scmp.eq.s32.totalorder %s21, 1
    %p149 = por %p147, %p148
    %p151 = scmp.ne.s32.totalorder %s136, %s150
    %p152 = scmp.eq.s32.totalorder %s21, 0
    %p153 = por %p151, %p152
    %s155 = sadd.s32 %s154, 1
    %p158 = scmp.eq.s32.totalorder %s15, 1
    %p159 = scmp.ne.s32.totalorder %s154, %s156
    %p160 = scmp.eq.s32.totalorder %s15, 0
    %p161 = por %p159, %p160
    %p162 = scmp.ne.s32.totalorder %s154, %s156
    %p163 = scmp.eq.s32.totalorder %s20, 1
    %p164 = por %p162, %p163
    %p165 = scmp.ne.s32.totalorder %s156, %s157
    %p166 = scmp.eq.s32.totalorder %s20, 0
    %p167 = por %p165, %p166
    %p168 = scmp.ne.s32.totalorder %s156, %s157
    %p169 = scmp.eq.s32.totalorder %s21, 1
    %p170 = por %p168, %p169
    %p172 = scmp.ne.s32.totalorder %s157, %s171
    %p173 = scmp.eq.s32.totalorder %s21, 0
    %p174 = por %p172, %p173
    %s176 = sadd.s32 %s175, 1
    %p179 = scmp.eq.s32.totalorder %s15, 1
    %p180 = scmp.ne.s32.totalorder %s175, %s177
    %p181 = scmp.eq.s32.totalorder %s15, 0
    %p182 = por %p180, %p181
    %p183 = scmp.ne.s32.totalorder %s175, %s177
    %p184 = scmp.eq.s32.totalorder %s20, 1
    %p185 = por %p183, %p184
    %p186 = scmp.ne.s32.totalorder %s177, %s178
    %p187 = scmp.eq.s32.totalorder %s20, 0
    %p188 = por %p186, %p187
    %p189 = scmp.ne.s32.totalorder %s177, %s178
    %p190 = scmp.eq.s32.totalorder %s21, 1
    %p191 = por %p189, %p190
    %p193 = scmp.ne.s32.totalorder %s178, %s192
    %p194 = scmp.eq.s32.totalorder %s21, 0
    %p195 = por %p193, %p194
    %s197 = sadd.s32 %s196, 1
    %p200 = scmp.eq.s32.totalorder %s15, 1
    %p201 = scmp.ne.s32.totalorder %s196, %s198
    %p202 = scmp.eq.s32.totalorder %s15, 0
    %p203 = por %p201, %p202
    %p204 = scmp.ne.s32.totalorder %s196, %s198
    %p205 = scmp.eq.s32.totalorder %s20, 1
    %p206 = por %p204, %p205
    %p207 = scmp.ne.s32.totalorder %s198, %s199
    %p208 = scmp.eq.s32.totalorder %s20, 0
    %p209 = por %p207, %p208
    %p210 = scmp.ne.s32.totalorder %s198, %s199
    %p211 = scmp.eq.s32.totalorder %s21, 1
    %p212 = por %p210, %p211
    %p214 = scmp.ne.s32.totalorder %s199, %s213
    %p215 = scmp.eq.s32.totalorder %s21, 0
    %p216 = por %p214, %p215
    %s217 = ssub.s32 %s15, %s22
    %p218 = scmp.eq.s32.totalorder %s217, 0
    %s220 = sadd.s32 %s219, 1
    %s221 = scalar_select %p218, %s219, %s220
    %p224 = pneg %p218
    %p225 = scmp.eq.s32.totalorder %s15, 1
    %p226 = por %p224, %p225
    %p227 = scmp.ne.s32.totalorder %s219, %s222
    %p228 = scmp.eq.s32.totalorder %s15, 0
    %p229 = por %p227, %p228
    %p230 = scmp.ne.s32.totalorder %s219, %s222
    %p231 = scmp.eq.s32.totalorder %s20, 1
    %p232 = por %p230, %p231
    %p233 = scmp.ne.s32.totalorder %s222, %s223
    %p234 = scmp.eq.s32.totalorder %s20, 0
    %p235 = por %p233, %p234
    %p236 = scmp.ne.s32.totalorder %s222, %s223
    %p237 = scmp.eq.s32.totalorder %s21, 1
    %p238 = por %p236, %p237
    %p240 = scmp.ne.s32.totalorder %s223, %s239
    %p241 = scmp.eq.s32.totalorder %s21, 0
    %p242 = por %p240, %p241
    %p243 = scmp.le.s32.totalorder 1, %s15
    %p244 = scmp.lt.s32.totalorder %s15, 3
    %p245 = pnand %p243, %p244
    %p246 = pneg %p245
    // Predicated region
    $region9: #{three_layer_cnn_forward.1} parent=5 // pred_check
      _
    $region10: #{three_layer_cnn_forward.1} parent=5 // pred_check_branch
      %248 = sbr.rel (%p245) target = $region12
    $region11: #{three_layer_cnn_forward.1} parent=5 // pred_region
      %s249 = ssub.s32 %s15, 1
      // Predicated region
      $region13: #{three_layer_cnn_forward.1} parent=11 // pred_check
        %p250 = pneg %p62
      $region14: #{three_layer_cnn_forward.1} parent=11 // pred_check_branch
        %252 = sbr.rel (%p250) target = $region16
      $region15: #{three_layer_cnn_forward.1} parent=11 // pred_region
        _
      $region16: #{three_layer_cnn_forward.1} parent=11 // pred_fallthru
        _
      // Predicated region
      $region17: #{three_layer_cnn_forward.1} parent=11 // pred_check
        %p253 = pneg %p83
      $region18: #{three_layer_cnn_forward.1} parent=11 // pred_check_branch
        %255 = sbr.rel (%p253) target = $region20
      $region19: #{three_layer_cnn_forward.1} parent=11 // pred_region
        _
      $region20: #{three_layer_cnn_forward.1} parent=11 // pred_fallthru
        _
      // Predicated region
      $region21: #{three_layer_cnn_forward.1} parent=11 // pred_check
        %p256 = pneg %p104
      $region22: #{three_layer_cnn_forward.1} parent=11 // pred_check_branch
        %258 = sbr.rel (%p256) target = $region24
      $region23: #{three_layer_cnn_forward.1} parent=11 // pred_region
        _
      $region24: #{three_layer_cnn_forward.1} parent=11 // pred_fallthru
        _
      // Predicated region
      $region25: #{three_layer_cnn_forward.1} parent=11 // pred_check
        %p259 = pneg %p125
      $region26: #{three_layer_cnn_forward.1} parent=11 // pred_check_branch
        %261 = sbr.rel (%p259) target = $region28
      $region27: #{three_layer_cnn_forward.1} parent=11 // pred_region
        _
      $region28: #{three_layer_cnn_forward.1} parent=11 // pred_fallthru
        _
      // Predicated region
      $region29: #{three_layer_cnn_forward.1} parent=11 // pred_check
        %p262 = pneg %p146
      $region30: #{three_layer_cnn_forward.1} parent=11 // pred_check_branch
        %264 = sbr.rel (%p262) target = $region32
      $region31: #{three_layer_cnn_forward.1} parent=11 // pred_region
        _
      $region32: #{three_layer_cnn_forward.1} parent=11 // pred_fallthru
        _
      // Predicated region
      $region33: #{three_layer_cnn_forward.1} parent=11 // pred_check
        %p265 = pneg %p167
      $region34: #{three_layer_cnn_forward.1} parent=11 // pred_check_branch
        %267 = sbr.rel (%p265) target = $region36
      $region35: #{three_layer_cnn_forward.1} parent=11 // pred_region
        _
      $region36: #{three_layer_cnn_forward.1} parent=11 // pred_fallthru
        _
      // Predicated region
      $region37: #{three_layer_cnn_forward.1} parent=11 // pred_check
        %p268 = pneg %p188
      $region38: #{three_layer_cnn_forward.1} parent=11 // pred_check_branch
        %270 = sbr.rel (%p268) target = $region40
      $region39: #{three_layer_cnn_forward.1} parent=11 // pred_region
        _
      $region40: #{three_layer_cnn_forward.1} parent=11 // pred_fallthru
        _
      // Predicated region
      $region41: #{three_layer_cnn_forward.1} parent=11 // pred_check
        %p271 = pneg %p209
      $region42: #{three_layer_cnn_forward.1} parent=11 // pred_check_branch
        %273 = sbr.rel (%p271) target = $region44
      $region43: #{three_layer_cnn_forward.1} parent=11 // pred_region
        _
      $region44: #{three_layer_cnn_forward.1} parent=11 // pred_fallthru
        _
    $region12: #{three_layer_cnn_forward.1} parent=5 // pred_fallthru
      _
    %p274 = scmp.lt.s32.totalorder %s15, 2
    // Predicated region
    $region45: #{three_layer_cnn_forward.1} parent=5 // pred_check
      %p275 = pneg %p274
    $region46: #{three_layer_cnn_forward.1} parent=5 // pred_check_branch
      %277 = sbr.rel (%p275) target = $region48
    $region47: #{three_layer_cnn_forward.1} parent=5 // pred_region
      // Predicated region
      $region49: #{three_layer_cnn_forward.1} parent=47 // pred_check
        %p278 = pneg %p35
      $region50: #{three_layer_cnn_forward.1} parent=47 // pred_check_branch
        %280 = sbr.rel (%p278) target = $region52
      $region51: #{three_layer_cnn_forward.1} parent=47 // pred_region
        %p281 = scmp.lt.s32.totalorder %s15, 1
        %s282 = scalar_select %p281, %s15, 1
        %s283 = smul.addr %s282, 2
        %s284 = smul.addr %s283, 8
        %s285 = scalar_lea.vmem %s0, %s284
      $region52: #{three_layer_cnn_forward.1} parent=47 // pred_fallthru
        _
    $region48: #{three_layer_cnn_forward.1} parent=5 // pred_fallthru
      _
    %p286 = scmp.le.s32.totalorder 1, %s15
    %p287 = scmp.lt.s32.totalorder %s15, 3
    %p288 = pnand %p286, %p287
    %p289 = pneg %p288
    // Predicated region
    $region53: #{three_layer_cnn_forward.1} parent=5 // pred_check
      _
    $region54: #{three_layer_cnn_forward.1} parent=5 // pred_check_branch
      %291 = sbr.rel (%p288) target = $region56
    $region55: #{three_layer_cnn_forward.1} parent=5 // pred_region
      %s292 = ssub.s32 %s15, 1
      %p293 = scmp.lt.s32.totalorder %s20, 1
      %s294 = scalar_select %p293, %s20, 1
      %s295 = smul.addr %s294, 2
      %s296 = smul.addr %s295, 8
      %s297 = scalar_lea.vmem %s0, %s296
      %p298 = pneg %p41
      %p299 = pneg %p38
      %p300 = pneg %p62
      %p301 = pneg %p59
      %p302 = pneg %p83
      %p303 = pneg %p80
      %p304 = pneg %p104
      %p305 = pneg %p101
      %p306 = pneg %p125
      %p307 = pneg %p122
      %p308 = pneg %p146
      %p309 = pneg %p143
      %p310 = pneg %p167
      %p311 = pneg %p164
      %p312 = pneg %p188
      %p313 = pneg %p185
      %p314 = pneg %p209
      %p315 = pneg %p206
      %p316 = pneg %p235
      %p317 = pneg %p232
      %p318 = scmp.lt.s32.totalorder %s20, 1
      %s319 = scalar_select %p318, %s20, 1
      %s320 = smul.addr %s319, 32
      %s321 = smul.addr %s320, 8
      %s322 = scalar_lea.vmem %s9, %s321
      %p323 = scmp.lt.s32.totalorder %s20, 1
      %s324 = scalar_select %p323, %s20, 1
      %s325 = smul.addr %s324, 2
      %s326 = smul.addr %s325, 8
      %s327 = scalar_lea.vmem %s0, %s326
      %p328 = scmp.lt.s32.totalorder %s20, 1
      %s329 = scalar_select %p328, %s20, 1
      %s330 = smul.addr %s329, 32
      %s331 = smul.addr %s330, 8
      %s332 = scalar_lea.vmem %s9, %s331
      %v334 = vld [vmem:[%s327] sm:$0xff]
      %v335 = vld [vmem:[%s327 + $0x8] sm:$0xff]
      %v336 = vpack.c.bf16 %v335, %v334
      %v337 = vld [vmem:[%s1] sm:$0xf]
      %v338 = vld [vmem:[%s1 + $0x4] sm:$0xf]
      %v339 = vld [vmem:[%s1 + $0x8] sm:$0xf]
      %v340 = vld [vmem:[%s1 + $0xc] sm:$0xf]
      %v341 = vld [vmem:[%s1 + $0x10] sm:$0xf]
      %v342 = vld [vmem:[%s1 + $0x14] sm:$0xf]
      %v343 = vld [vmem:[%s1 + $0x18] sm:$0xf]
      %v344 = vld [vmem:[%s1 + $0x1c] sm:$0xf]
      %v345 = vld [vmem:[%s2] sm:$0x1]
      %v347 = vlaneseq
      %v348 = vshrl.u32 %v347, 7
      %v349 = vsub.s32 0, %v348
      %v350 = vrot.slane %v345, %v349
      %v360 = vunpack.c.l.b16 %v337
      %v361 = vunpack.c.l.b16 %v338
      %v362 = vunpack.c.l.b16 %v339
      %v363 = vunpack.c.l.b16 %v340
      %v364 = vunpack.c.l.b16 %v341
      %v365 = vunpack.c.l.b16 %v342
      %v366 = vunpack.c.l.b16 %v343
      %v367 = vunpack.c.l.b16 %v344
      %v368 = vpack.c.b16 %v361, %v360
      %v369 = vpack.c.b16 %v363, %v362
      %v370 = vpack.c.b16 %v365, %v364
      %v371 = vpack.c.b16 %v367, %v366
      %vm376 = vcmask 523264
      %v378 = vsel %vm376, %v336, 0
      %380 = vmatprep.subr.bf16.mxu0 0
      %381 = vmatpush1.bf16.msra.mxu0 0
      %382 = vmatprep.subr.bf16.mxu0 0
      %383 = vmatpush1.bf16.msra.mxu0 0
      %384 = vmatprep.subr.bf16.mxu0 0
      %385 = vmatpush1.bf16.msra.mxu0 0
      %386 = vmatprep.subr.bf16.mxu0 0
      %387 = vmatpush1.bf16.msra.mxu0 0
      %388 = vmatprep.subr.bf16.mxu0 0
      %389 = vmatpush1.bf16.msra.mxu0 %v371
      %390 = vmatprep.subr.bf16.mxu0 0
      %391 = vmatpush1.bf16.msra.mxu0 %v370
      %392 = vmatprep.subr.bf16.mxu0 0
      %393 = vmatpush1.bf16.msra.mxu0 %v369
      %394 = vmatprep.subr.bf16.mxu0 0
      %395 = vmatpush1.bf16.msra.mxu0 %v368
      %396 = vmatprep.subr.bf16.mxu0 0
      %397 = vmatpush2.bf16.msra.mxu0 0
      %398 = vmatprep.subr.bf16.mxu0 0
      %399 = vmatpush2.bf16.msra.mxu0 0
      %400 = vmatprep.subr.bf16.mxu0 0
      %401 = vmatpush2.bf16.msra.mxu0 0
      %402 = vmatprep.subr.bf16.mxu0 0
      %403 = vmatpush2.bf16.msra.mxu0 0
      %404 = vmatprep.subr.bf16.mxu0 0
      %405 = vmatpush2.bf16.msra.mxu0 0
      %406 = vmatprep.subr.bf16.mxu0 0
      %407 = vmatpush2.bf16.msra.mxu0 0
      %408 = vmatprep.subr.bf16.mxu0 0
      %409 = vmatpush2.bf16.msra.mxu0 0
      %410 = vmatprep.subr.bf16.mxu0 0
      %411 = vmatpush2.bf16.msra.mxu0 0
      %412 = vmatprep.mubr.bf16.mxu0 0
      %413 = vmatmul.mubr.bf16.gmra.mxu0 %v378
      %v414 = vpop.f32.mrf.mxu0
      %v415 = vadd.f32 %v350, %v414
      %v416 = vpop.f32.mrf.mxu0
      %v417 = vpop.f32.mrf.mxu0
      %v418 = vadd.f32 %v350, %v417
      %v419 = vpop.f32.mrf.mxu0
      %420 = vdwg.mxu0
      %v421 = vmax.f32 %v415, 0.0
      %v422 = vmax.f32 %v418, 0.0
      %v423 = vlaneseq
      %v424 = vshrl.u32 %v423, 7
      %v425 = vadd.s32 %v424, 8
      %vm426 = vcmp.eq.s32.totalorder %v424, 0
      %vm427 = vcmp.eq.s32.totalorder %v425, 0
      %v428 = vrot.slane %v421, 7
      %v429 = vrot.slane %v422, 7
      %vm430 = vcmp.lt.s32.totalorder %v424, 1
      %v431 = vsel %vm430, %v428, %v429
      %v432 = vsel %vm430, %v429, %v428
      %v433 = vsel %vm426, 0.0, %v432
      %v434 = vsel %vm427, 0.0, %v431
      %vm435 = vcmp.eq.s32.totalorder %v424, 15
      %vm436 = vcmp.eq.s32.totalorder %v425, 15
      %v437 = vrot.slane %v421, 1
      %v438 = vrot.slane %v422, 1
      %vm439 = vcmp.lt.s32.totalorder %v424, 7
      %v440 = vsel %vm439, %v437, %v438
      %v441 = vsel %vm439, %v438, %v437
      %v442 = vsel %vm435, 0.0, %v440
      %v443 = vsel %vm436, 0.0, %v441
      %v444 = vpack.c.bf16 %v434, %v433
      %v445 = vpack.c.bf16 %v422, %v421
      %v446 = vpack.c.bf16 %v443, %v442
      %v447 = vld [vmem:[%s3] sm:$0xf]
      %v448 = vld [vmem:[%s3 + $0x4] sm:$0xf]
      %v449 = vld [vmem:[%s3 + $0x8] sm:$0xf]
      %v450 = vld [vmem:[%s3 + $0xc] sm:$0xf]
      %v451 = vld [vmem:[%s3 + $0x10] sm:$0xf]
      %v452 = vld [vmem:[%s3 + $0x14] sm:$0xf]
      %v453 = vld [vmem:[%s3 + $0x18] sm:$0xf]
      %v454 = vld [vmem:[%s3 + $0x1c] sm:$0xf]
      %v455 = vld [vmem:[%s3 + $0x20] sm:$0xf]
      %v456 = vld [vmem:[%s3 + $0x24] sm:$0xf]
      %v457 = vld [vmem:[%s3 + $0x28] sm:$0xf]
      %v458 = vld [vmem:[%s3 + $0x2c] sm:$0xf]
      %v459 = vld [vmem:[%s3 + $0x30] sm:$0xf]
      %v460 = vld [vmem:[%s3 + $0x34] sm:$0xf]
      %v461 = vld [vmem:[%s3 + $0x38] sm:$0xf]
      %v462 = vld [vmem:[%s3 + $0x3c] sm:$0xf]
      %v463 = vld [vmem:[%s3 + $0x40] sm:$0xf]
      %v464 = vld [vmem:[%s3 + $0x44] sm:$0xf]
      %v465 = vld [vmem:[%s3 + $0x48] sm:$0xf]
      %v466 = vld [vmem:[%s3 + $0x4c] sm:$0xf]
      %v467 = vld [vmem:[%s3 + $0x50] sm:$0xf]
      %v468 = vld [vmem:[%s3 + $0x54] sm:$0xf]
      %v469 = vld [vmem:[%s3 + $0x58] sm:$0xf]
      %v470 = vld [vmem:[%s3 + $0x5c] sm:$0xf]
      %v471 = vld [vmem:[%s3 + $0x60] sm:$0xf]
      %v472 = vld [vmem:[%s3 + $0x64] sm:$0xf]
      %v473 = vld [vmem:[%s3 + $0x68] sm:$0xf]
      %v474 = vld [vmem:[%s3 + $0x6c] sm:$0xf]
      %v475 = vld [vmem:[%s3 + $0x70] sm:$0xf]
      %v476 = vld [vmem:[%s3 + $0x74] sm:$0xf]
      %v477 = vld [vmem:[%s3 + $0x78] sm:$0xf]
      %v478 = vld [vmem:[%s3 + $0x7c] sm:$0xf]
      %v479 = vld [vmem:[%s3 + $0x80] sm:$0xf]
      %v480 = vld [vmem:[%s3 + $0x84] sm:$0xf]
      %v481 = vld [vmem:[%s3 + $0x88] sm:$0xf]
      %v482 = vld [vmem:[%s3 + $0x8c] sm:$0xf]
      %v483 = vld [vmem:[%s3 + $0x90] sm:$0xf]
      %v484 = vld [vmem:[%s3 + $0x94] sm:$0xf]
      %v485 = vld [vmem:[%s3 + $0x98] sm:$0xf]
      %v486 = vld [vmem:[%s3 + $0x9c] sm:$0xf]
      %v487 = vld [vmem:[%s3 + $0xa0] sm:$0xf]
      %v488 = vld [vmem:[%s3 + $0xa4] sm:$0xf]
      %v489 = vld [vmem:[%s3 + $0xa8] sm:$0xf]
      %v490 = vld [vmem:[%s3 + $0xac] sm:$0xf]
      %v491 = vld [vmem:[%s3 + $0xb0] sm:$0xf]
      %v492 = vld [vmem:[%s3 + $0xb4] sm:$0xf]
      %v493 = vld [vmem:[%s3 + $0xb8] sm:$0xf]
      %v494 = vld [vmem:[%s3 + $0xbc] sm:$0xf]
      %v495 = vld [vmem:[%s4] sm:$0x1]
      %v497 = vlaneseq
      %v498 = vshrl.u32 %v497, 7
      %v499 = vsub.s32 0, %v498
      %v500 = vrot.slane %v495, %v499
      %v550 = vunpack.c.l.b16 %v447
      %v551 = vunpack.c.l.b16 %v448
      %v552 = vunpack.c.l.b16 %v449
      %v553 = vunpack.c.l.b16 %v450
      %v554 = vunpack.c.l.b16 %v451
      %v555 = vunpack.c.l.b16 %v452
      %v556 = vunpack.c.l.b16 %v453
      %v557 = vunpack.c.l.b16 %v454
      %v558 = vunpack.c.l.b16 %v455
      %v559 = vunpack.c.l.b16 %v456
      %v560 = vunpack.c.l.b16 %v457
      %v561 = vunpack.c.l.b16 %v458
      %v562 = vunpack.c.l.b16 %v459
      %v563 = vunpack.c.l.b16 %v460
      %v564 = vunpack.c.l.b16 %v461
      %v565 = vunpack.c.l.b16 %v462
      %v566 = vunpack.c.l.b16 %v463
      %v567 = vunpack.c.l.b16 %v464
      %v568 = vunpack.c.l.b16 %v465
      %v569 = vunpack.c.l.b16 %v466
      %v570 = vunpack.c.l.b16 %v467
      %v571 = vunpack.c.l.b16 %v468
      %v572 = vunpack.c.l.b16 %v469
      %v573 = vunpack.c.l.b16 %v470
      %v574 = vunpack.c.l.b16 %v471
      %v575 = vunpack.c.l.b16 %v472
      %v576 = vunpack.c.l.b16 %v473
      %v577 = vunpack.c.l.b16 %v474
      %v578 = vunpack.c.l.b16 %v475
      %v579 = vunpack.c.l.b16 %v476
      %v580 = vunpack.c.l.b16 %v477
      %v581 = vunpack.c.l.b16 %v478
      %v582 = vunpack.c.l.b16 %v479
      %v583 = vunpack.c.l.b16 %v480
      %v584 = vunpack.c.l.b16 %v481
      %v585 = vunpack.c.l.b16 %v482
      %v586 = vunpack.c.l.b16 %v483
      %v587 = vunpack.c.l.b16 %v484
      %v588 = vunpack.c.l.b16 %v485
      %v589 = vunpack.c.l.b16 %v486
      %v590 = vunpack.c.l.b16 %v487
      %v591 = vunpack.c.l.b16 %v488
      %v592 = vunpack.c.l.b16 %v489
      %v593 = vunpack.c.l.b16 %v490
      %v594 = vunpack.c.l.b16 %v491
      %v595 = vunpack.c.l.b16 %v492
      %v596 = vunpack.c.l.b16 %v493
      %v597 = vunpack.c.l.b16 %v494
      %v598 = vpack.c.b16 %v551, %v550
      %v599 = vpack.c.b16 %v553, %v552
      %v600 = vpack.c.b16 %v555, %v554
      %v601 = vpack.c.b16 %v557, %v556
      %v602 = vpack.c.b16 %v559, %v558
      %v603 = vpack.c.b16 %v561, %v560
      %v604 = vpack.c.b16 %v563, %v562
      %v605 = vpack.c.b16 %v565, %v564
      %v606 = vpack.c.b16 %v567, %v566
      %v607 = vpack.c.b16 %v569, %v568
      %v608 = vpack.c.b16 %v571, %v570
      %v609 = vpack.c.b16 %v573, %v572
      %v610 = vpack.c.b16 %v575, %v574
      %v611 = vpack.c.b16 %v577, %v576
      %v612 = vpack.c.b16 %v579, %v578
      %v613 = vpack.c.b16 %v581, %v580
      %v614 = vpack.c.b16 %v583, %v582
      %v615 = vpack.c.b16 %v585, %v584
      %v616 = vpack.c.b16 %v587, %v586
      %v617 = vpack.c.b16 %v589, %v588
      %v618 = vpack.c.b16 %v591, %v590
      %v619 = vpack.c.b16 %v593, %v592
      %v620 = vpack.c.b16 %v595, %v594
      %v621 = vpack.c.b16 %v597, %v596
      %646 = vmatprep.subr.bf16.mxu0 0
      %647 = vmatpush1.bf16.msra.mxu0 %v605
      %648 = vmatprep.subr.bf16.mxu0 0
      %649 = vmatpush1.bf16.msra.mxu0 %v604
      %650 = vmatprep.subr.bf16.mxu0 0
      %651 = vmatpush1.bf16.msra.mxu0 %v603
      %652 = vmatprep.subr.bf16.mxu0 0
      %653 = vmatpush1.bf16.msra.mxu0 %v602
      %654 = vmatprep.subr.bf16.mxu0 0
      %655 = vmatpush1.bf16.msra.mxu0 %v601
      %656 = vmatprep.subr.bf16.mxu0 0
      %657 = vmatpush1.bf16.msra.mxu0 %v600
      %658 = vmatprep.subr.bf16.mxu0 0
      %659 = vmatpush1.bf16.msra.mxu0 %v599
      %660 = vmatprep.subr.bf16.mxu0 0
      %661 = vmatpush1.bf16.msra.mxu0 %v598
      %662 = vmatprep.subr.bf16.mxu0 0
      %663 = vmatpush2.bf16.msra.mxu0 %v613
      %664 = vmatprep.subr.bf16.mxu0 0
      %665 = vmatpush2.bf16.msra.mxu0 %v612
      %666 = vmatprep.subr.bf16.mxu0 0
      %667 = vmatpush2.bf16.msra.mxu0 %v611
      %668 = vmatprep.subr.bf16.mxu0 0
      %669 = vmatpush2.bf16.msra.mxu0 %v610
      %670 = vmatprep.subr.bf16.mxu0 0
      %671 = vmatpush2.bf16.msra.mxu0 %v609
      %672 = vmatprep.subr.bf16.mxu0 0
      %673 = vmatpush2.bf16.msra.mxu0 %v608
      %674 = vmatprep.subr.bf16.mxu0 0
      %675 = vmatpush2.bf16.msra.mxu0 %v607
      %676 = vmatprep.subr.bf16.mxu0 0
      %677 = vmatpush2.bf16.msra.mxu0 %v606
      %678 = vmatprep.mubr.bf16.mxu0 %v445
      %679 = vmatmul.mubr.bf16.gmra.mxu0 %v444
      %v680 = vpop.f32.mrf.mxu0
      %v681 = vadd.f32 %v500, %v680
      %v682 = vpop.f32.mrf.mxu0
      %v683 = vpop.f32.mrf.mxu0
      %v684 = vadd.f32 %v500, %v683
      %v685 = vpop.f32.mrf.mxu0
      %686 = vdwg.mxu0
      %687 = vmatprep.subr.bf16.mxu0 0
      %688 = vmatpush1.bf16.msra.mxu0 %v621
      %689 = vmatprep.subr.bf16.mxu0 0
      %690 = vmatpush1.bf16.msra.mxu0 %v620
      %691 = vmatprep.subr.bf16.mxu0 0
      %692 = vmatpush1.bf16.msra.mxu0 %v619
      %693 = vmatprep.subr.bf16.mxu0 0
      %694 = vmatpush1.bf16.msra.mxu0 %v618
      %695 = vmatprep.subr.bf16.mxu0 0
      %696 = vmatpush1.bf16.msra.mxu0 %v617
      %697 = vmatprep.subr.bf16.mxu0 0
      %698 = vmatpush1.bf16.msra.mxu0 %v616
      %699 = vmatprep.subr.bf16.mxu0 0
      %700 = vmatpush1.bf16.msra.mxu0 %v615
      %701 = vmatprep.subr.bf16.mxu0 0
      %702 = vmatpush1.bf16.msra.mxu0 %v614
      %703 = vmatprep.subr.bf16.mxu0 0
      %704 = vmatpush2.bf16.msra.mxu0 0
      %705 = vmatprep.subr.bf16.mxu0 0
      %706 = vmatpush2.bf16.msra.mxu0 0
      %707 = vmatprep.subr.bf16.mxu0 0
      %708 = vmatpush2.bf16.msra.mxu0 0
      %709 = vmatprep.subr.bf16.mxu0 0
      %710 = vmatpush2.bf16.msra.mxu0 0
      %711 = vmatprep.subr.bf16.mxu0 0
      %712 = vmatpush2.bf16.msra.mxu0 0
      %713 = vmatprep.subr.bf16.mxu0 0
      %714 = vmatpush2.bf16.msra.mxu0 0
      %715 = vmatprep.subr.bf16.mxu0 0
      %716 = vmatpush2.bf16.msra.mxu0 0
      %717 = vmatprep.subr.bf16.mxu0 0
      %718 = vmatpush2.bf16.msra.mxu0 0
      %719 = vmatprep.mubr.bf16.mxu0 0
      %720 = vmatmul.mubr.bf16.gmra.mxu0 %v446
      %v721 = vpop.f32.mrf.mxu0
      %v722 = vadd.f32 %v681, %v721
      %v723 = vpop.f32.mrf.mxu0
      %v724 = vpop.f32.mrf.mxu0
      %v725 = vadd.f32 %v684, %v724
      %v726 = vpop.f32.mrf.mxu0
      %727 = vdwg.mxu0
      %v728 = vmax.f32 %v722, 0.0
      %v729 = vmax.f32 %v725, 0.0
      %v730 = vrot.slane %v728, 7
      %v731 = vrot.slane %v729, 7
      %v732 = vsel %vm430, %v730, %v731
      %v733 = vsel %vm430, %v731, %v730
      %v734 = vsel %vm426, 0.0, %v733
      %v735 = vsel %vm427, 0.0, %v732
      %v736 = vrot.slane %v728, 1
      %v737 = vrot.slane %v729, 1
      %v738 = vsel %vm439, %v736, %v737
      %v739 = vsel %vm439, %v737, %v736
      %v740 = vsel %vm435, 0.0, %v738
      %v741 = vsel %vm436, 0.0, %v739
      %v742 = vpack.c.bf16 %v735, %v734
      %v743 = vpack.c.bf16 %v729, %v728
      %v744 = vpack.c.bf16 %v741, %v740
      %v745 = vld [vmem:[%s5] sm:$0xf]
      %v746 = vld [vmem:[%s5 + $0x4] sm:$0xf]
      %v747 = vld [vmem:[%s5 + $0x8] sm:$0xf]
      %v748 = vld [vmem:[%s5 + $0xc] sm:$0xf]
      %v749 = vld [vmem:[%s5 + $0x10] sm:$0xf]
      %v750 = vld [vmem:[%s5 + $0x14] sm:$0xf]
      %v751 = vld [vmem:[%s5 + $0x18] sm:$0xf]
      %v752 = vld [vmem:[%s5 + $0x1c] sm:$0xf]
      %v753 = vld [vmem:[%s5 + $0x20] sm:$0xf]
      %v754 = vld [vmem:[%s5 + $0x24] sm:$0xf]
      %v755 = vld [vmem:[%s5 + $0x28] sm:$0xf]
      %v756 = vld [vmem:[%s5 + $0x2c] sm:$0xf]
      %v757 = vld [vmem:[%s5 + $0x30] sm:$0xf]
      %v758 = vld [vmem:[%s5 + $0x34] sm:$0xf]
      %v759 = vld [vmem:[%s5 + $0x38] sm:$0xf]
      %v760 = vld [vmem:[%s5 + $0x3c] sm:$0xf]
      %v761 = vld [vmem:[%s5 + $0x40] sm:$0xf]
      %v762 = vld [vmem:[%s5 + $0x44] sm:$0xf]
      %v763 = vld [vmem:[%s5 + $0x48] sm:$0xf]
      %v764 = vld [vmem:[%s5 + $0x4c] sm:$0xf]
      %v765 = vld [vmem:[%s5 + $0x50] sm:$0xf]
      %v766 = vld [vmem:[%s5 + $0x54] sm:$0xf]
      %v767 = vld [vmem:[%s5 + $0x58] sm:$0xf]
      %v768 = vld [vmem:[%s5 + $0x5c] sm:$0xf]
      %v769 = vld [vmem:[%s5 + $0x60] sm:$0xf]
      %v770 = vld [vmem:[%s5 + $0x64] sm:$0xf]
      %v771 = vld [vmem:[%s5 + $0x68] sm:$0xf]
      %v772 = vld [vmem:[%s5 + $0x6c] sm:$0xf]
      %v773 = vld [vmem:[%s5 + $0x70] sm:$0xf]
      %v774 = vld [vmem:[%s5 + $0x74] sm:$0xf]
      %v775 = vld [vmem:[%s5 + $0x78] sm:$0xf]
      %v776 = vld [vmem:[%s5 + $0x7c] sm:$0xf]
      %v777 = vld [vmem:[%s5 + $0x80] sm:$0xf]
      %v778 = vld [vmem:[%s5 + $0x84] sm:$0xf]
      %v779 = vld [vmem:[%s5 + $0x88] sm:$0xf]
      %v780 = vld [vmem:[%s5 + $0x8c] sm:$0xf]
      %v781 = vld [vmem:[%s5 + $0x90] sm:$0xf]
      %v782 = vld [vmem:[%s5 + $0x94] sm:$0xf]
      %v783 = vld [vmem:[%s5 + $0x98] sm:$0xf]
      %v784 = vld [vmem:[%s5 + $0x9c] sm:$0xf]
      %v785 = vld [vmem:[%s5 + $0xa0] sm:$0xf]
      %v786 = vld [vmem:[%s5 + $0xa4] sm:$0xf]
      %v787 = vld [vmem:[%s5 + $0xa8] sm:$0xf]
      %v788 = vld [vmem:[%s5 + $0xac] sm:$0xf]
      %v789 = vld [vmem:[%s5 + $0xb0] sm:$0xf]
      %v790 = vld [vmem:[%s5 + $0xb4] sm:$0xf]
      %v791 = vld [vmem:[%s5 + $0xb8] sm:$0xf]
      %v792 = vld [vmem:[%s5 + $0xbc] sm:$0xf]
      %v793 = vld [vmem:[%s6] sm:$0x1]
      %v795 = vlaneseq
      %v796 = vshrl.u32 %v795, 7
      %v797 = vsub.s32 0, %v796
      %v798 = vrot.slane %v793, %v797
      %v848 = vunpack.c.l.b16 %v745
      %v849 = vunpack.c.l.b16 %v746
      %v850 = vunpack.c.l.b16 %v747
      %v851 = vunpack.c.l.b16 %v748
      %v852 = vunpack.c.l.b16 %v749
      %v853 = vunpack.c.l.b16 %v750
      %v854 = vunpack.c.l.b16 %v751
      %v855 = vunpack.c.l.b16 %v752
      %v856 = vunpack.c.l.b16 %v753
      %v857 = vunpack.c.l.b16 %v754
      %v858 = vunpack.c.l.b16 %v755
      %v859 = vunpack.c.l.b16 %v756
      %v860 = vunpack.c.l.b16 %v757
      %v861 = vunpack.c.l.b16 %v758
      %v862 = vunpack.c.l.b16 %v759
      %v863 = vunpack.c.l.b16 %v760
      %v864 = vunpack.c.l.b16 %v761
      %v865 = vunpack.c.l.b16 %v762
      %v866 = vunpack.c.l.b16 %v763
      %v867 = vunpack.c.l.b16 %v764
      %v868 = vunpack.c.l.b16 %v765
      %v869 = vunpack.c.l.b16 %v766
      %v870 = vunpack.c.l.b16 %v767
      %v871 = vunpack.c.l.b16 %v768
      %v872 = vunpack.c.l.b16 %v769
      %v873 = vunpack.c.l.b16 %v770
      %v874 = vunpack.c.l.b16 %v771
      %v875 = vunpack.c.l.b16 %v772
      %v876 = vunpack.c.l.b16 %v773
      %v877 = vunpack.c.l.b16 %v774
      %v878 = vunpack.c.l.b16 %v775
      %v879 = vunpack.c.l.b16 %v776
      %v880 = vunpack.c.l.b16 %v777
      %v881 = vunpack.c.l.b16 %v778
      %v882 = vunpack.c.l.b16 %v779
      %v883 = vunpack.c.l.b16 %v780
      %v884 = vunpack.c.l.b16 %v781
      %v885 = vunpack.c.l.b16 %v782
      %v886 = vunpack.c.l.b16 %v783
      %v887 = vunpack.c.l.b16 %v784
      %v888 = vunpack.c.l.b16 %v785
      %v889 = vunpack.c.l.b16 %v786
      %v890 = vunpack.c.l.b16 %v787
      %v891 = vunpack.c.l.b16 %v788
      %v892 = vunpack.c.l.b16 %v789
      %v893 = vunpack.c.l.b16 %v790
      %v894 = vunpack.c.l.b16 %v791
      %v895 = vunpack.c.l.b16 %v792
      %v896 = vpack.c.b16 %v849, %v848
      %v897 = vpack.c.b16 %v851, %v850
      %v898 = vpack.c.b16 %v853, %v852
      %v899 = vpack.c.b16 %v855, %v854
      %v900 = vpack.c.b16 %v857, %v856
      %v901 = vpack.c.b16 %v859, %v858
      %v902 = vpack.c.b16 %v861, %v860
      %v903 = vpack.c.b16 %v863, %v862
      %v904 = vpack.c.b16 %v865, %v864
      %v905 = vpack.c.b16 %v867, %v866
      %v906 = vpack.c.b16 %v869, %v868
      %v907 = vpack.c.b16 %v871, %v870
      %v908 = vpack.c.b16 %v873, %v872
      %v909 = vpack.c.b16 %v875, %v874
      %v910 = vpack.c.b16 %v877, %v876
      %v911 = vpack.c.b16 %v879, %v878
      %v912 = vpack.c.b16 %v881, %v880
      %v913 = vpack.c.b16 %v883, %v882
      %v914 = vpack.c.b16 %v885, %v884
      %v915 = vpack.c.b16 %v887, %v886
      %v916 = vpack.c.b16 %v889, %v888
      %v917 = vpack.c.b16 %v891, %v890
      %v918 = vpack.c.b16 %v893, %v892
      %v919 = vpack.c.b16 %v895, %v894
      %944 = vmatprep.subr.bf16.mxu0 0
      %945 = vmatpush1.bf16.msra.mxu0 %v903
      %946 = vmatprep.subr.bf16.mxu0 0
      %947 = vmatpush1.bf16.msra.mxu0 %v902
      %948 = vmatprep.subr.bf16.mxu0 0
      %949 = vmatpush1.bf16.msra.mxu0 %v901
      %950 = vmatprep.subr.bf16.mxu0 0
      %951 = vmatpush1.bf16.msra.mxu0 %v900
      %952 = vmatprep.subr.bf16.mxu0 0
      %953 = vmatpush1.bf16.msra.mxu0 %v899
      %954 = vmatprep.subr.bf16.mxu0 0
      %955 = vmatpush1.bf16.msra.mxu0 %v898
      %956 = vmatprep.subr.bf16.mxu0 0
      %957 = vmatpush1.bf16.msra.mxu0 %v897
      %958 = vmatprep.subr.bf16.mxu0 0
      %959 = vmatpush1.bf16.msra.mxu0 %v896
      %960 = vmatprep.subr.bf16.mxu0 0
      %961 = vmatpush2.bf16.msra.mxu0 %v911
      %962 = vmatprep.subr.bf16.mxu0 0
      %963 = vmatpush2.bf16.msra.mxu0 %v910
      %964 = vmatprep.subr.bf16.mxu0 0
      %965 = vmatpush2.bf16.msra.mxu0 %v909
      %966 = vmatprep.subr.bf16.mxu0 0
      %967 = vmatpush2.bf16.msra.mxu0 %v908
      %968 = vmatprep.subr.bf16.mxu0 0
      %969 = vmatpush2.bf16.msra.mxu0 %v907
      %970 = vmatprep.subr.bf16.mxu0 0
      %971 = vmatpush2.bf16.msra.mxu0 %v906
      %972 = vmatprep.subr.bf16.mxu0 0
      %973 = vmatpush2.bf16.msra.mxu0 %v905
      %974 = vmatprep.subr.bf16.mxu0 0
      %975 = vmatpush2.bf16.msra.mxu0 %v904
      %976 = vmatprep.mubr.bf16.mxu0 %v743
      %977 = vmatmul.mubr.bf16.gmra.mxu0 %v742
      %v978 = vpop.f32.mrf.mxu0
      %v979 = vadd.f32 %v798, %v978
      %v980 = vpop.f32.mrf.mxu0
      %v981 = vpop.f32.mrf.mxu0
      %v982 = vadd.f32 %v798, %v981
      %v983 = vpop.f32.mrf.mxu0
      %984 = vdwg.mxu0
      %985 = vmatprep.subr.bf16.mxu0 0
      %986 = vmatpush1.bf16.msra.mxu0 %v919
      %987 = vmatprep.subr.bf16.mxu0 0
      %988 = vmatpush1.bf16.msra.mxu0 %v918
      %989 = vmatprep.subr.bf16.mxu0 0
      %990 = vmatpush1.bf16.msra.mxu0 %v917
      %991 = vmatprep.subr.bf16.mxu0 0
      %992 = vmatpush1.bf16.msra.mxu0 %v916
      %993 = vmatprep.subr.bf16.mxu0 0
      %994 = vmatpush1.bf16.msra.mxu0 %v915
      %995 = vmatprep.subr.bf16.mxu0 0
      %996 = vmatpush1.bf16.msra.mxu0 %v914
      %997 = vmatprep.subr.bf16.mxu0 0
      %998 = vmatpush1.bf16.msra.mxu0 %v913
      %999 = vmatprep.subr.bf16.mxu0 0
      %1000 = vmatpush1.bf16.msra.mxu0 %v912
      %1001 = vmatprep.subr.bf16.mxu0 0
      %1002 = vmatpush2.bf16.msra.mxu0 0
      %1003 = vmatprep.subr.bf16.mxu0 0
      %1004 = vmatpush2.bf16.msra.mxu0 0
      %1005 = vmatprep.subr.bf16.mxu0 0
      %1006 = vmatpush2.bf16.msra.mxu0 0
      %1007 = vmatprep.subr.bf16.mxu0 0
      %1008 = vmatpush2.bf16.msra.mxu0 0
      %1009 = vmatprep.subr.bf16.mxu0 0
      %1010 = vmatpush2.bf16.msra.mxu0 0
      %1011 = vmatprep.subr.bf16.mxu0 0
      %1012 = vmatpush2.bf16.msra.mxu0 0
      %1013 = vmatprep.subr.bf16.mxu0 0
      %1014 = vmatpush2.bf16.msra.mxu0 0
      %1015 = vmatprep.subr.bf16.mxu0 0
      %1016 = vmatpush2.bf16.msra.mxu0 0
      %1017 = vmatprep.mubr.bf16.mxu0 0
      %1018 = vmatmul.mubr.bf16.gmra.mxu0 %v744
      %v1019 = vpop.f32.mrf.mxu0
      %v1020 = vadd.f32 %v979, %v1019
      %v1021 = vpop.f32.mrf.mxu0
      %v1022 = vpop.f32.mrf.mxu0
      %v1023 = vadd.f32 %v982, %v1022
      %v1024 = vpop.f32.mrf.mxu0
      %1025 = vdwg.mxu0
      %v1026 = vmax.f32 %v1020, 0.0
      %v1027 = vmax.f32 %v1023, 0.0
      %v1028 = vpack.c.bf16 %v1027, %v1026
      %v1029 = vld [vmem:[%s8] sm:$0xff]
      %v1030 = vld [vmem:[%s8 + $0x8] sm:$0xff]
      %v1031 = vld [vmem:[%s8 + $0x10] sm:$0xff]
      %v1032 = vld [vmem:[%s8 + $0x18] sm:$0xff]
      %v1033 = vld [vmem:[%s8 + $0x20] sm:$0xff]
      %v1034 = vld [vmem:[%s8 + $0x28] sm:$0xff]
      %v1035 = vld [vmem:[%s8 + $0x30] sm:$0xff]
      %v1036 = vld [vmem:[%s8 + $0x38] sm:$0xff]
      %v1037 = vld [vmem:[%s8 + $0x40] sm:$0xff]
      %v1038 = vld [vmem:[%s8 + $0x48] sm:$0xff]
      %v1039 = vld [vmem:[%s8 + $0x50] sm:$0xff]
      %v1040 = vld [vmem:[%s8 + $0x58] sm:$0xff]
      %v1041 = vld [vmem:[%s8 + $0x60] sm:$0xff]
      %v1042 = vld [vmem:[%s8 + $0x68] sm:$0xff]
      %v1043 = vld [vmem:[%s8 + $0x70] sm:$0xff]
      %v1044 = vld [vmem:[%s8 + $0x78] sm:$0xff]
      %v1045 = vld [vmem:[%s8 + $0x80] sm:$0xff]
      %v1046 = vld [vmem:[%s8 + $0x88] sm:$0xff]
      %v1047 = vld [vmem:[%s8 + $0x90] sm:$0xff]
      %v1048 = vld [vmem:[%s8 + $0x98] sm:$0xff]
      %v1049 = vld [vmem:[%s8 + $0xa0] sm:$0xff]
      %v1050 = vld [vmem:[%s8 + $0xa8] sm:$0xff]
      %v1051 = vld [vmem:[%s8 + $0xb0] sm:$0xff]
      %v1052 = vld [vmem:[%s8 + $0xb8] sm:$0xff]
      %v1053 = vld [vmem:[%s8 + $0xc0] sm:$0xff]
      %v1054 = vld [vmem:[%s8 + $0xc8] sm:$0xff]
      %v1055 = vld [vmem:[%s8 + $0xd0] sm:$0xff]
      %v1056 = vld [vmem:[%s8 + $0xd8] sm:$0xff]
      %v1057 = vld [vmem:[%s8 + $0xe0] sm:$0xff]
      %v1058 = vld [vmem:[%s8 + $0xe8] sm:$0xff]
      %v1059 = vld [vmem:[%s8 + $0xf0] sm:$0xff]
      %v1060 = vld [vmem:[%s8 + $0xf8] sm:$0xff]
      %v1093 = vunpack.c.l.b16 %v1029
      %v1094 = vunpack.c.h.b16 %v1029
      %v1095 = vunpack.c.l.b16 %v1030
      %v1096 = vunpack.c.h.b16 %v1030
      %v1097 = vunpack.c.l.b16 %v1031
      %v1098 = vunpack.c.h.b16 %v1031
      %v1099 = vunpack.c.l.b16 %v1032
      %v1100 = vunpack.c.h.b16 %v1032
      %v1101 = vunpack.c.l.b16 %v1033
      %v1102 = vunpack.c.h.b16 %v1033
      %v1103 = vunpack.c.l.b16 %v1034
      %v1104 = vunpack.c.h.b16 %v1034
      %v1105 = vunpack.c.l.b16 %v1035
      %v1106 = vunpack.c.h.b16 %v1035
      %v1107 = vunpack.c.l.b16 %v1036
      %v1108 = vunpack.c.h.b16 %v1036
      %v1109 = vunpack.c.l.b16 %v1037
      %v1110 = vunpack.c.h.b16 %v1037
      %v1111 = vunpack.c.l.b16 %v1038
      %v1112 = vunpack.c.h.b16 %v1038
      %v1113 = vunpack.c.l.b16 %v1039
      %v1114 = vunpack.c.h.b16 %v1039
      %v1115 = vunpack.c.l.b16 %v1040
      %v1116 = vunpack.c.h.b16 %v1040
      %v1117 = vunpack.c.l.b16 %v1041
      %v1118 = vunpack.c.h.b16 %v1041
      %v1119 = vunpack.c.l.b16 %v1042
      %v1120 = vunpack.c.h.b16 %v1042
      %v1121 = vunpack.c.l.b16 %v1043
      %v1122 = vunpack.c.h.b16 %v1043
      %v1123 = vunpack.c.l.b16 %v1044
      %v1124 = vunpack.c.h.b16 %v1044
      %v1125 = vunpack.c.l.b16 %v1045
      %v1126 = vunpack.c.h.b16 %v1045
      %v1127 = vunpack.c.l.b16 %v1046
      %v1128 = vunpack.c.h.b16 %v1046
      %v1129 = vunpack.c.l.b16 %v1047
      %v1130 = vunpack.c.h.b16 %v1047
      %v1131 = vunpack.c.l.b16 %v1048
      %v1132 = vunpack.c.h.b16 %v1048
      %v1133 = vunpack.c.l.b16 %v1049
      %v1134 = vunpack.c.h.b16 %v1049
      %v1135 = vunpack.c.l.b16 %v1050
      %v1136 = vunpack.c.h.b16 %v1050
      %v1137 = vunpack.c.l.b16 %v1051
      %v1138 = vunpack.c.h.b16 %v1051
      %v1139 = vunpack.c.l.b16 %v1052
      %v1140 = vunpack.c.h.b16 %v1052
      %v1141 = vunpack.c.l.b16 %v1053
      %v1142 = vunpack.c.h.b16 %v1053
      %v1143 = vunpack.c.l.b16 %v1054
      %v1144 = vunpack.c.h.b16 %v1054
      %v1145 = vunpack.c.l.b16 %v1055
      %v1146 = vunpack.c.h.b16 %v1055
      %v1147 = vunpack.c.l.b16 %v1056
      %v1148 = vunpack.c.h.b16 %v1056
      %v1149 = vunpack.c.l.b16 %v1057
      %v1150 = vunpack.c.h.b16 %v1057
      %v1151 = vunpack.c.l.b16 %v1058
      %v1152 = vunpack.c.h.b16 %v1058
      %v1153 = vunpack.c.l.b16 %v1059
      %v1154 = vunpack.c.h.b16 %v1059
      %v1155 = vunpack.c.l.b16 %v1060
      %v1156 = vunpack.c.h.b16 %v1060
      %v1157 = vpack.c.b16 %v1097, %v1093
      %v1158 = vpack.c.b16 %v1098, %v1094
      %v1159 = vpack.c.b16 %v1099, %v1095
      %v1160 = vpack.c.b16 %v1100, %v1096
      %v1161 = vpack.c.b16 %v1105, %v1101
      %v1162 = vpack.c.b16 %v1106, %v1102
      %v1163 = vpack.c.b16 %v1107, %v1103
      %v1164 = vpack.c.b16 %v1108, %v1104
      %v1165 = vpack.c.b16 %v1113, %v1109
      %v1166 = vpack.c.b16 %v1114, %v1110
      %v1167 = vpack.c.b16 %v1115, %v1111
      %v1168 = vpack.c.b16 %v1116, %v1112
      %v1169 = vpack.c.b16 %v1121, %v1117
      %v1170 = vpack.c.b16 %v1122, %v1118
      %v1171 = vpack.c.b16 %v1123, %v1119
      %v1172 = vpack.c.b16 %v1124, %v1120
      %v1173 = vpack.c.b16 %v1129, %v1125
      %v1174 = vpack.c.b16 %v1130, %v1126
      %v1175 = vpack.c.b16 %v1131, %v1127
      %v1176 = vpack.c.b16 %v1132, %v1128
      %v1177 = vpack.c.b16 %v1137, %v1133
      %v1178 = vpack.c.b16 %v1138, %v1134
      %v1179 = vpack.c.b16 %v1139, %v1135
      %v1180 = vpack.c.b16 %v1140, %v1136
      %v1181 = vpack.c.b16 %v1145, %v1141
      %v1182 = vpack.c.b16 %v1146, %v1142
      %v1183 = vpack.c.b16 %v1147, %v1143
      %v1184 = vpack.c.b16 %v1148, %v1144
      %v1185 = vpack.c.b16 %v1153, %v1149
      %v1186 = vpack.c.b16 %v1154, %v1150
      %v1187 = vpack.c.b16 %v1155, %v1151
      %v1188 = vpack.c.b16 %v1156, %v1152
      %1221 = vmatprep.subr.bf16.mxu0 %v1186
      %1222 = vmatpush1.bf16.msra.mxu0 %v1185
      %1223 = vmatprep.subr.bf16.mxu0 %v1182
      %1224 = vmatpush1.bf16.msra.mxu0 %v1181
      %1225 = vmatprep.subr.bf16.mxu0 %v1178
      %1226 = vmatpush1.bf16.msra.mxu0 %v1177
      %1227 = vmatprep.subr.bf16.mxu0 %v1174
      %1228 = vmatpush1.bf16.msra.mxu0 %v1173
      %1229 = vmatprep.subr.bf16.mxu0 %v1170
      %1230 = vmatpush1.bf16.msra.mxu0 %v1169
      %1231 = vmatprep.subr.bf16.mxu0 %v1166
      %1232 = vmatpush1.bf16.msra.mxu0 %v1165
      %1233 = vmatprep.subr.bf16.mxu0 %v1162
      %1234 = vmatpush1.bf16.msra.mxu0 %v1161
      %1235 = vmatprep.subr.bf16.mxu0 %v1158
      %1236 = vmatpush1.bf16.msra.mxu0 %v1157
      %1237 = vmatprep.subr.bf16.mxu0 0
      %1238 = vmatpush2.bf16.msra.mxu0 0
      %1239 = vmatprep.subr.bf16.mxu0 0
      %1240 = vmatpush2.bf16.msra.mxu0 0
      %1241 = vmatprep.subr.bf16.mxu0 0
      %1242 = vmatpush2.bf16.msra.mxu0 0
      %1243 = vmatprep.subr.bf16.mxu0 0
      %1244 = vmatpush2.bf16.msra.mxu0 0
      %1245 = vmatprep.subr.bf16.mxu0 0
      %1246 = vmatpush2.bf16.msra.mxu0 0
      %1247 = vmatprep.subr.bf16.mxu0 0
      %1248 = vmatpush2.bf16.msra.mxu0 0
      %1249 = vmatprep.subr.bf16.mxu0 0
      %1250 = vmatpush2.bf16.msra.mxu0 0
      %1251 = vmatprep.subr.bf16.mxu0 0
      %1252 = vmatpush2.bf16.msra.mxu0 0
      %1253 = vmatprep.mubr.bf16.mxu0 0
      %1254 = vmatmul.mubr.bf16.gmra.mxu0 %v1028
      %v1255 = vpop.f32.mrf.mxu0
      %v1256 = vadd.f32 0.0, %v1255
      %v1257 = vpop.f32.mrf.mxu0
      %v1258 = vadd.f32 0.0, %v1257
      %v1259 = vpop.f32.mrf.mxu0
      %v1260 = vadd.f32 0.0, %v1259
      %v1261 = vpop.f32.mrf.mxu0
      %v1262 = vadd.f32 0.0, %v1261
      %1263 = vdwg.mxu0
      %1264 = vmatprep.subr.bf16.mxu0 %v1188
      %1265 = vmatpush1.bf16.msra.mxu0 %v1187
      %1266 = vmatprep.subr.bf16.mxu0 %v1184
      %1267 = vmatpush1.bf16.msra.mxu0 %v1183
      %1268 = vmatprep.subr.bf16.mxu0 %v1180
      %1269 = vmatpush1.bf16.msra.mxu0 %v1179
      %1270 = vmatprep.subr.bf16.mxu0 %v1176
      %1271 = vmatpush1.bf16.msra.mxu0 %v1175
      %1272 = vmatprep.subr.bf16.mxu0 %v1172
      %1273 = vmatpush1.bf16.msra.mxu0 %v1171
      %1274 = vmatprep.subr.bf16.mxu0 %v1168
      %1275 = vmatpush1.bf16.msra.mxu0 %v1167
      %1276 = vmatprep.subr.bf16.mxu0 %v1164
      %1277 = vmatpush1.bf16.msra.mxu0 %v1163
      %1278 = vmatprep.subr.bf16.mxu0 %v1160
      %1279 = vmatpush1.bf16.msra.mxu0 %v1159
      %1280 = vmatprep.subr.bf16.mxu0 0
      %1281 = vmatpush2.bf16.msra.mxu0 0
      %1282 = vmatprep.subr.bf16.mxu0 0
      %1283 = vmatpush2.bf16.msra.mxu0 0
      %1284 = vmatprep.subr.bf16.mxu0 0
      %1285 = vmatpush2.bf16.msra.mxu0 0
      %1286 = vmatprep.subr.bf16.mxu0 0
      %1287 = vmatpush2.bf16.msra.mxu0 0
      %1288 = vmatprep.subr.bf16.mxu0 0
      %1289 = vmatpush2.bf16.msra.mxu0 0
      %1290 = vmatprep.subr.bf16.mxu0 0
      %1291 = vmatpush2.bf16.msra.mxu0 0
      %1292 = vmatprep.subr.bf16.mxu0 0
      %1293 = vmatpush2.bf16.msra.mxu0 0
      %1294 = vmatprep.subr.bf16.mxu0 0
      %1295 = vmatpush2.bf16.msra.mxu0 0
      %1296 = vmatprep.mubr.bf16.mxu0 0
      %1297 = vmatmul.mubr.bf16.gmra.mxu0 %v1028
      %v1298 = vpop.f32.mrf.mxu0
      %v1299 = vadd.f32 0.0, %v1298
      %v1300 = vpop.f32.mrf.mxu0
      %v1301 = vadd.f32 0.0, %v1300
      %v1302 = vpop.f32.mrf.mxu0
      %v1303 = vadd.f32 0.0, %v1302
      %v1304 = vpop.f32.mrf.mxu0
      %v1305 = vadd.f32 0.0, %v1304
      %1306 = vdwg.mxu0
      %v1307 = vld [vmem:[%s7] sm:$0xf]
      %v1308 = vld [vmem:[%s7 + $0x4] sm:$0xf]
      %v1309 = vld [vmem:[%s7 + $0x8] sm:$0xf]
      %v1310 = vld [vmem:[%s7 + $0xc] sm:$0xf]
      %v1311 = vld [vmem:[%s7 + $0x10] sm:$0xf]
      %v1312 = vld [vmem:[%s7 + $0x14] sm:$0xf]
      %v1313 = vld [vmem:[%s7 + $0x18] sm:$0xf]
      %v1314 = vld [vmem:[%s7 + $0x1c] sm:$0xf]
      %v1315 = vpack.c.bf16 %v1260, %v1256
      %v1316 = vpack.c.bf16 %v1262, %v1258
      %v1317 = vpack.c.bf16 %v1303, %v1299
      %v1318 = vpack.c.bf16 %v1305, %v1301
      %v1327 = vunpack.c.l.b16 %v1307
      %v1328 = vunpack.c.l.b16 %v1308
      %v1329 = vunpack.c.l.b16 %v1309
      %v1330 = vunpack.c.l.b16 %v1310
      %v1331 = vunpack.c.l.b16 %v1311
      %v1332 = vunpack.c.l.b16 %v1312
      %v1333 = vunpack.c.l.b16 %v1313
      %v1334 = vunpack.c.l.b16 %v1314
      %v1335 = vpack.c.b16 %v1328, %v1327
      %v1336 = vpack.c.b16 %v1330, %v1329
      %v1337 = vpack.c.b16 %v1332, %v1331
      %v1338 = vpack.c.b16 %v1334, %v1333
      %vm1339 = vcmask 130048
      %v1341 = vsel %vm1339, %v1335, 0
      %v1344 = vsel %vm1339, %v1336, 0
      %v1347 = vsel %vm1339, %v1337, 0
      %v1350 = vsel %vm1339, %v1338, 0
      %1352 = vmatprep.subr.bf16.mxu0 0
      %1353 = vmatpush1.bf16.msra.mxu0 0
      %1354 = vmatprep.subr.bf16.mxu0 0
      %1355 = vmatpush1.bf16.msra.mxu0 0
      %1356 = vmatprep.subr.bf16.mxu0 0
      %1357 = vmatpush1.bf16.msra.mxu0 0
      %1358 = vmatprep.subr.bf16.mxu0 0
      %1359 = vmatpush1.bf16.msra.mxu0 0
      %1360 = vmatprep.subr.bf16.mxu0 0
      %1361 = vmatpush1.bf16.msra.mxu0 0
      %1362 = vmatprep.subr.bf16.mxu0 0
      %1363 = vmatpush1.bf16.msra.mxu0 0
      %1364 = vmatprep.subr.bf16.mxu0 0
      %1365 = vmatpush1.bf16.msra.mxu0 0
      %1366 = vmatprep.subr.bf16.mxu0 %v1316
      %1367 = vmatpush1.bf16.msra.mxu0 %v1315
      %1368 = vmatprep.subr.bf16.mxu0 0
      %1369 = vmatpush2.bf16.msra.mxu0 0
      %1370 = vmatprep.subr.bf16.mxu0 0
      %1371 = vmatpush2.bf16.msra.mxu0 0
      %1372 = vmatprep.subr.bf16.mxu0 0
      %1373 = vmatpush2.bf16.msra.mxu0 0
      %1374 = vmatprep.subr.bf16.mxu0 0
      %1375 = vmatpush2.bf16.msra.mxu0 0
      %1376 = vmatprep.subr.bf16.mxu0 0
      %1377 = vmatpush2.bf16.msra.mxu0 0
      %1378 = vmatprep.subr.bf16.mxu0 0
      %1379 = vmatpush2.bf16.msra.mxu0 0
      %1380 = vmatprep.subr.bf16.mxu0 0
      %1381 = vmatpush2.bf16.msra.mxu0 0
      %1382 = vmatprep.subr.bf16.mxu0 0
      %1383 = vmatpush2.bf16.msra.mxu0 0
      %1384 = vmatprep.mubr.bf16.mxu0 0
      %1385 = vmatmul.mubr.bf16.gmra.mxu0 %v1341
      %v1386 = vpop.f32.mrf.mxu0
      %v1387 = vadd.f32 0.0, %v1386
      %v1388 = vpop.f32.mrf.mxu0
      %v1389 = vadd.f32 0.0, %v1388
      %v1390 = vpop.f32.mrf.mxu0
      %v1391 = vadd.f32 0.0, %v1390
      %v1392 = vpop.f32.mrf.mxu0
      %v1393 = vadd.f32 0.0, %v1392
      %1394 = vmatprep.mubr.bf16.mxu0 0
      %1395 = vmatmul.mubr.bf16.gmra.mxu0 %v1344
      %v1396 = vpop.f32.mrf.mxu0
      %v1397 = vadd.f32 0.0, %v1396
      %v1398 = vpop.f32.mrf.mxu0
      %v1399 = vadd.f32 0.0, %v1398
      %v1400 = vpop.f32.mrf.mxu0
      %v1401 = vadd.f32 0.0, %v1400
      %v1402 = vpop.f32.mrf.mxu0
      %v1403 = vadd.f32 0.0, %v1402
      %1404 = vmatprep.mubr.bf16.mxu0 0
      %1405 = vmatmul.mubr.bf16.gmra.mxu0 %v1347
      %v1406 = vpop.f32.mrf.mxu0
      %v1407 = vadd.f32 0.0, %v1406
      %v1408 = vpop.f32.mrf.mxu0
      %v1409 = vadd.f32 0.0, %v1408
      %v1410 = vpop.f32.mrf.mxu0
      %v1411 = vadd.f32 0.0, %v1410
      %v1412 = vpop.f32.mrf.mxu0
      %v1413 = vadd.f32 0.0, %v1412
      %1414 = vmatprep.mubr.bf16.mxu0 0
      %1415 = vmatmul.mubr.bf16.gmra.mxu0 %v1350
      %v1416 = vpop.f32.mrf.mxu0
      %v1417 = vadd.f32 0.0, %v1416
      %v1418 = vpop.f32.mrf.mxu0
      %v1419 = vadd.f32 0.0, %v1418
      %v1420 = vpop.f32.mrf.mxu0
      %v1421 = vadd.f32 0.0, %v1420
      %v1422 = vpop.f32.mrf.mxu0
      %v1423 = vadd.f32 0.0, %v1422
      %1424 = vdwg.mxu0
      %1425 = vmatprep.subr.bf16.mxu0 0
      %1426 = vmatpush1.bf16.msra.mxu0 0
      %1427 = vmatprep.subr.bf16.mxu0 0
      %1428 = vmatpush1.bf16.msra.mxu0 0
      %1429 = vmatprep.subr.bf16.mxu0 0
      %1430 = vmatpush1.bf16.msra.mxu0 0
      %1431 = vmatprep.subr.bf16.mxu0 0
      %1432 = vmatpush1.bf16.msra.mxu0 0
      %1433 = vmatprep.subr.bf16.mxu0 0
      %1434 = vmatpush1.bf16.msra.mxu0 0
      %1435 = vmatprep.subr.bf16.mxu0 0
      %1436 = vmatpush1.bf16.msra.mxu0 0
      %1437 = vmatprep.subr.bf16.mxu0 0
      %1438 = vmatpush1.bf16.msra.mxu0 0
      %1439 = vmatprep.subr.bf16.mxu0 %v1318
      %1440 = vmatpush1.bf16.msra.mxu0 %v1317
      %1441 = vmatprep.subr.bf16.mxu0 0
      %1442 = vmatpush2.bf16.msra.mxu0 0
      %1443 = vmatprep.subr.bf16.mxu0 0
      %1444 = vmatpush2.bf16.msra.mxu0 0
      %1445 = vmatprep.subr.bf16.mxu0 0
      %1446 = vmatpush2.bf16.msra.mxu0 0
      %1447 = vmatprep.subr.bf16.mxu0 0
      %1448 = vmatpush2.bf16.msra.mxu0 0
      %1449 = vmatprep.subr.bf16.mxu0 0
      %1450 = vmatpush2.bf16.msra.mxu0 0
      %1451 = vmatprep.subr.bf16.mxu0 0
      %1452 = vmatpush2.bf16.msra.mxu0 0
      %1453 = vmatprep.subr.bf16.mxu0 0
      %1454 = vmatpush2.bf16.msra.mxu0 0
      %1455 = vmatprep.subr.bf16.mxu0 0
      %1456 = vmatpush2.bf16.msra.mxu0 0
      %1457 = vmatprep.mubr.bf16.mxu0 0
      %1458 = vmatmul.mubr.bf16.gmra.mxu0 %v1341
      %v1459 = vpop.f32.mrf.mxu0
      %v1460 = vadd.f32 0.0, %v1459
      %v1461 = vpop.f32.mrf.mxu0
      %v1462 = vadd.f32 0.0, %v1461
      %v1463 = vpop.f32.mrf.mxu0
      %v1464 = vadd.f32 0.0, %v1463
      %v1465 = vpop.f32.mrf.mxu0
      %v1466 = vadd.f32 0.0, %v1465
      %1467 = vmatprep.mubr.bf16.mxu0 0
      %1468 = vmatmul.mubr.bf16.gmra.mxu0 %v1344
      %v1469 = vpop.f32.mrf.mxu0
      %v1470 = vadd.f32 0.0, %v1469
      %v1471 = vpop.f32.mrf.mxu0
      %v1472 = vadd.f32 0.0, %v1471
      %v1473 = vpop.f32.mrf.mxu0
      %v1474 = vadd.f32 0.0, %v1473
      %v1475 = vpop.f32.mrf.mxu0
      %v1476 = vadd.f32 0.0, %v1475
      %1477 = vmatprep.mubr.bf16.mxu0 0
      %1478 = vmatmul.mubr.bf16.gmra.mxu0 %v1347
      %v1479 = vpop.f32.mrf.mxu0
      %v1480 = vadd.f32 0.0, %v1479
      %v1481 = vpop.f32.mrf.mxu0
      %v1482 = vadd.f32 0.0, %v1481
      %v1483 = vpop.f32.mrf.mxu0
      %v1484 = vadd.f32 0.0, %v1483
      %v1485 = vpop.f32.mrf.mxu0
      %v1486 = vadd.f32 0.0, %v1485
      %1487 = vmatprep.mubr.bf16.mxu0 0
      %1488 = vmatmul.mubr.bf16.gmra.mxu0 %v1350
      %v1489 = vpop.f32.mrf.mxu0
      %v1490 = vadd.f32 0.0, %v1489
      %v1491 = vpop.f32.mrf.mxu0
      %v1492 = vadd.f32 0.0, %v1491
      %v1493 = vpop.f32.mrf.mxu0
      %v1494 = vadd.f32 0.0, %v1493
      %v1495 = vpop.f32.mrf.mxu0
      %v1496 = vadd.f32 0.0, %v1495
      %1497 = vdwg.mxu0
      %1498 = vst [vmem:[%s332] sm:$0xff] %v1387
      %1499 = vst [vmem:[%s332 + $0x8] sm:$0xff] %v1389
      %1500 = vst [vmem:[%s332 + $0x10] sm:$0xff] %v1460
      %1501 = vst [vmem:[%s332 + $0x18] sm:$0xff] %v1462
      %1502 = vst [vmem:[%s332 + $0x20] sm:$0xff] %v1391
      %1503 = vst [vmem:[%s332 + $0x28] sm:$0xff] %v1393
      %1504 = vst [vmem:[%s332 + $0x30] sm:$0xff] %v1464
      %1505 = vst [vmem:[%s332 + $0x38] sm:$0xff] %v1466
      %1506 = vst [vmem:[%s332 + $0x40] sm:$0xff] %v1397
      %1507 = vst [vmem:[%s332 + $0x48] sm:$0xff] %v1399
      %1508 = vst [vmem:[%s332 + $0x50] sm:$0xff] %v1470
      %1509 = vst [vmem:[%s332 + $0x58] sm:$0xff] %v1472
      %1510 = vst [vmem:[%s332 + $0x60] sm:$0xff] %v1401
      %1511 = vst [vmem:[%s332 + $0x68] sm:$0xff] %v1403
      %1512 = vst [vmem:[%s332 + $0x70] sm:$0xff] %v1474
      %1513 = vst [vmem:[%s332 + $0x78] sm:$0xff] %v1476
      %1514 = vst [vmem:[%s332 + $0x80] sm:$0xff] %v1407
      %1515 = vst [vmem:[%s332 + $0x88] sm:$0xff] %v1409
      %1516 = vst [vmem:[%s332 + $0x90] sm:$0xff] %v1480
      %1517 = vst [vmem:[%s332 + $0x98] sm:$0xff] %v1482
      %1518 = vst [vmem:[%s332 + $0xa0] sm:$0xff] %v1411
      %1519 = vst [vmem:[%s332 + $0xa8] sm:$0xff] %v1413
      %1520 = vst [vmem:[%s332 + $0xb0] sm:$0xff] %v1484
      %1521 = vst [vmem:[%s332 + $0xb8] sm:$0xff] %v1486
      %1522 = vst [vmem:[%s332 + $0xc0] sm:$0xff] %v1417
      %1523 = vst [vmem:[%s332 + $0xc8] sm:$0xff] %v1419
      %1524 = vst [vmem:[%s332 + $0xd0] sm:$0xff] %v1490
      %1525 = vst [vmem:[%s332 + $0xd8] sm:$0xff] %v1492
      %1526 = vst [vmem:[%s332 + $0xe0] sm:$0xff] %v1421
      %1527 = vst [vmem:[%s332 + $0xe8] sm:$0xff] %v1423
      %1528 = vst [vmem:[%s332 + $0xf0] sm:$0xff] %v1494
      %1529 = vst [vmem:[%s332 + $0xf8] sm:$0xff] %v1496
      %p1530 = scmp.lt.s32.totalorder %s20, 1
      %s1531 = scalar_select %p1530, %s20, 1
      %s1532 = smul.addr %s1531, 32
      %s1533 = smul.addr %s1532, 8
      %s1534 = scalar_lea.vmem %s9, %s1533
      // Predicated region
      $region57: #{three_layer_cnn_forward.1} parent=55 // pred_check
        %p1535 = pneg %p232
      $region58: #{three_layer_cnn_forward.1} parent=55 // pred_check_branch
        %1537 = sbr.rel (%p1535) target = $region60
      $region59: #{three_layer_cnn_forward.1} parent=55 // pred_region
        _
      $region60: #{three_layer_cnn_forward.1} parent=55 // pred_fallthru
        _
    $region56: #{three_layer_cnn_forward.1} parent=5 // pred_fallthru
      _
    %p1538 = scmp.le.s32.totalorder 2, %s15
    // Predicated region
    $region61: #{three_layer_cnn_forward.1} parent=5 // pred_check
      %p1539 = pneg %p1538
    $region62: #{three_layer_cnn_forward.1} parent=5 // pred_check_branch
      %1541 = sbr.rel (%p1539) target = $region64
    $region63: #{three_layer_cnn_forward.1} parent=5 // pred_region
      %s1542 = ssub.s32 %s15, 2
      // Predicated region
      $region65: #{three_layer_cnn_forward.1} parent=63 // pred_check
        %p1543 = pneg %p238
      $region66: #{three_layer_cnn_forward.1} parent=63 // pred_check_branch
        %1545 = sbr.rel (%p1543) target = $region68
      $region67: #{three_layer_cnn_forward.1} parent=63 // pred_region
        %p1546 = scmp.lt.s32.totalorder %s21, 1
        %s1547 = scalar_select %p1546, %s21, 1
        %s1548 = smul.addr %s1547, 32
        %s1549 = smul.addr %s1548, 8
        %s1550 = scalar_lea.vmem %s9, %s1549
      $region68: #{three_layer_cnn_forward.1} parent=63 // pred_fallthru
        _
    $region64: #{three_layer_cnn_forward.1} parent=5 // pred_fallthru
      _
  $region6: #{three_layer_cnn_forward.1} parent=0 // loop_footer
    %s19 = sadd.s32 1, %s15
  $region7: #{three_layer_cnn_forward.1} parent=0 // loop_footer_branch
    %14 = sbr.rel target = $region3
  $region8: #{three_layer_cnn_forward.1} parent=0 // loop_exit
    _

</llo_original>
